<compile_context>
chip_gen: v7x
topology: tpu7x:2x2x1
jax: 0.10.0
libtpu: 0.0.40
codegen_flags: <defaults>
</compile_context>

<pallas_src>
import jax
import jax.numpy as jnp
from jax import lax
from jax.experimental import pallas as pl
from jax.experimental.pallas import tpu as pltpu


def _round_up(x, m):
    return (x + m - 1) // m * m


# ---------------------------------------------------------------------------
# Weight / bias packing (tiny, wrapper-side)
# ---------------------------------------------------------------------------
def _pack_conv3x3(w_hwio, cin_p, cout_p, dtype):
    """(3,3,Cin,Cout) HWIO -> (Cout_p, 9*Cin_p), zero-padded channels."""
    _, _, c_in, c_out = w_hwio.shape
    wp = jnp.zeros((3, 3, cin_p, cout_p), jnp.float32)
    wp = wp.at[:, :, :c_in, :c_out].set(w_hwio.astype(jnp.float32))
    # column index = (kh*3 + kw) * cin_p + ci  (matches the tap order below)
    return jnp.transpose(wp, (3, 0, 1, 2)).reshape(cout_p, 9 * cin_p).astype(dtype)


def _pack_conv1x1(w_io, cin_p, cout_p, dtype):
    """(Cin,Cout) IO -> (Cout_p, Cin_p), zero-padded channels."""
    c_in, c_out = w_io.shape
    wp = jnp.zeros((cout_p, cin_p), jnp.float32)
    wp = wp.at[:c_out, :c_in].set(w_io.T.astype(jnp.float32))
    return wp.astype(dtype)


def _pack_bias(b, cout_p):
    """(Cout,) -> (Cout_p, 1) f32 so it lane-broadcasts against (Cout_p, L)."""
    return jnp.pad(b.astype(jnp.float32), (0, cout_p - b.shape[0])).reshape(cout_p, 1)


# ---------------------------------------------------------------------------
# Fused residual-block kernel
# ---------------------------------------------------------------------------
def _make_residual_kernel(H, W, imgs, cin_p, cout_p, use_1x1conv):
    HW = H * W
    L = imgs * HW
    taps = [(dh, dw) for dh in (-1, 0, 1) for dw in (-1, 0, 1)]

    def kernel(*refs):
        if use_1x1conv:
            (x_ref, w1_ref, b1_ref, w2_ref, b2_ref,
             w3_ref, b3_ref, o_ref, col_ref) = refs
        else:
            x_ref, w1_ref, b1_ref, w2_ref, b2_ref, o_ref, col_ref = refs

        op_dtype = col_ref.dtype
        x_f32 = x_ref[0]                               # (cin_p, L) f32

        # Per-pixel (row, col) within each image.  Bitwise when dims are
        # powers of two; //,% fallback otherwise.
        pos = lax.broadcasted_iota(jnp.int32, (1, L), 1)
        if (W & (W - 1)) == 0 and (HW & (HW - 1)) == 0:
            col = pos & (W - 1)
            row = (pos & (HW - 1)) >> (W.bit_length() - 1)
        else:
            pin = pos % HW
            row = pin // W
            col = pin % W

        def tap_mask(dh, dw):
            # Only the comparisons that can actually fail; centre tap -> None.
            conds = []
            if dh == -1:
                conds.append(row >= 1)
            elif dh == 1:
                conds.append(row < H - 1)
            if dw == -1:
                conds.append(col >= 1)
            elif dw == 1:
                conds.append(col < W - 1)
            if not conds:
                return None
            m = conds[0]
            for c in conds[1:]:
                m = m & c
            return m

        def fill_im2col(a, c):
            # a: (c, L) f32 activation.  Write the 9 shifted+masked taps into
            # the shared VMEM scratch (cast to the MXU operand dtype).
            # pltpu.roll = XLU lane rotate (overlaps MXU); masks = VPU selects.
            # Masked borders also zero any cross-image wrap of the roll.
            for t, (dh, dw) in enumerate(taps):
                s = dh * W + dw
                shifted = a if s == 0 else pltpu.roll(a, (-s) % L, 1)
                m = tap_mask(dh, dw)
                if m is not None:
                    shifted = jnp.where(m, shifted, 0.0)
                col_ref[t * c:(t + 1) * c, :] = shifted.astype(op_dtype)
            return col_ref[0:9 * c, :]

        # conv1 (3x3, pad=1) + bias + ReLU: one (Cout,9*Cin)@(9*Cin,L) matmul.
        y = jnp.dot(w1_ref[...], fill_im2col(x_f32, cin_p),
                    preferred_element_type=jnp.float32)
        y = jnp.maximum(y + b1_ref[...], 0.0)          # (cout_p, L) f32, on-chip

        # Shortcut branch, also kept on-chip.
        if use_1x1conv:
            sc = jnp.dot(w3_ref[...], x_f32.astype(op_dtype),
                         preferred_element_type=jnp.float32)
            sc = sc + b3_ref[...]
        else:
            sc = x_f32                                 # requires Cin == Cout

        # conv2 (3x3, pad=1) + bias + residual add + ReLU (scratch reused).
        z = jnp.dot(w2_ref[...], fill_im2col(y, cout_p),
                    preferred_element_type=jnp.float32)
        z = jnp.maximum(z + b2_ref[...] + sc, 0.0)
        # Full-sublane, unmasked store; channel padding dropped in the wrapper.
        o_ref[0] = z.astype(o_ref.dtype)

    return kernel


# ---------------------------------------------------------------------------
# Residual block forward (NCHW in / NCHW out, PyTorch semantics)
# ---------------------------------------------------------------------------
def residual_forward(x_nchw, params, use_1x1conv=True, *,
                     use_bf16=True, fold_batch=None):
    N, c_in, H, W = x_nchw.shape
    c_out = params["w1"].shape[-1]
    HW = H * W
    op_dtype = jnp.bfloat16 if use_bf16 else jnp.float32
    pad_to = 16 if use_bf16 else 8          # keep per-tap scratch slots tile-aligned
    cin_p = _round_up(c_in, pad_to)
    cout_p = _round_up(c_out, pad_to)

    if fold_batch is None:
        # Small images / small batch: fold N into the lane axis (one grid
        # step, no per-step overhead, widest lane-dense store).
        fold_batch = (N * HW) <= 8192

    if fold_batch:
        imgs, blocks, L = N, 1, N * HW
        # NCHW -> (1, C, N*HW); lane index = n*HW + h*W + w.
        x_flat = jnp.transpose(x_nchw, (1, 0, 2, 3)).reshape(1, c_in, L)
    else:
        imgs, blocks, L = 1, N, HW
        x_flat = x_nchw.reshape(N, c_in, HW)    # pure reshape, no transpose
    if cin_p != c_in:
        x_flat = jnp.pad(x_flat, ((0, 0), (0, cin_p - c_in), (0, 0)))

    w1p = _pack_conv3x3(params["w1"], cin_p, cout_p, op_dtype)
    b1p = _pack_bias(params["b1"], cout_p)
    w2p = _pack_conv3x3(params["w2"], cout_p, cout_p, op_dtype)
    b2p = _pack_bias(params["b2"], cout_p)

    args = [x_flat, w1p, b1p, w2p, b2p]
    in_specs = [
        pl.BlockSpec((1, cin_p, L), lambda n: (n, 0, 0)),
        pl.BlockSpec((cout_p, 9 * cin_p), lambda n: (0, 0)),   # weights resident
        pl.BlockSpec((cout_p, 1), lambda n: (0, 0)),
        pl.BlockSpec((cout_p, 9 * cout_p), lambda n: (0, 0)),
        pl.BlockSpec((cout_p, 1), lambda n: (0, 0)),
    ]
    if use_1x1conv:
        w3p = _pack_conv1x1(params["w3"], cin_p, cout_p, op_dtype)
        b3p = _pack_bias(params["b3"], cout_p)
        args += [w3p, b3p]
        in_specs += [
            pl.BlockSpec((cout_p, cin_p), lambda n: (0, 0)),
            pl.BlockSpec((cout_p, 1), lambda n: (0, 0)),
        ]
    else:
        assert c_in == c_out, "identity shortcut requires matching channels"

    c_max = max(cin_p, cout_p)
    itemsize = 2 if use_bf16 else 4
    flops = 2 * N * HW * (9 * cin_p * cout_p + 9 * cout_p * cout_p
                          + (cin_p * cout_p if use_1x1conv else 0))
    bytes_accessed = (4 * (int(x_flat.size) + blocks * cout_p * L)
                      + itemsize * sum(int(a.size) for a in args[1:]))

    out = pl.pallas_call(
        _make_residual_kernel(H, W, imgs, cin_p, cout_p, use_1x1conv),
        out_shape=jax.ShapeDtypeStruct((blocks, cout_p, L), x_nchw.dtype),
        grid=(blocks,),
        in_specs=in_specs,
        out_specs=pl.BlockSpec((1, cout_p, L), lambda n: (n, 0, 0)),
        scratch_shapes=[pltpu.VMEM((9 * c_max, L), op_dtype)],  # shared im2col
        compiler_params=pltpu.CompilerParams(
            dimension_semantics=("parallel",),
            vmem_limit_bytes=32 * 1024 * 1024,
        ),
        cost_estimate=pl.CostEstimate(
            flops=flops, transcendentals=0, bytes_accessed=bytes_accessed),
    )(*args)

    # Drop the channel padding at the HBM level (in-kernel store stays full).
    if fold_batch:
        out = out.reshape(cout_p, N, H, W).transpose(1, 0, 2, 3)
    else:
        out = out.reshape(N, cout_p, H, W)
    return out[:, :c_out]


# ---------------------------------------------------------------------------
# Pure-JAX reference (XLA convs, f32) for a sanity check
# ---------------------------------------------------------------------------
def residual_reference(x_nchw, params, use_1x1conv=True):
    dn = ("NCHW", "OIHW", "NCHW")
    w1 = jnp.transpose(params["w1"], (3, 2, 0, 1))
    w2 = jnp.transpose(params["w2"], (3, 2, 0, 1))
    y = lax.conv_general_dilated(x_nchw, w1, (1, 1), ((1, 1), (1, 1)),
                                 dimension_numbers=dn)
    y = jnp.maximum(y + params["b1"][None, :, None, None], 0.0)
    y = lax.conv_general_dilated(y, w2, (1, 1), ((1, 1), (1, 1)),
                                 dimension_numbers=dn)
    y = y + params["b2"][None, :, None, None]
    if use_1x1conv:
        w3 = jnp.transpose(params["w3"], (1, 0))[:, :, None, None]  # IO -> OIHW
        sc = lax.conv_general_dilated(x_nchw, w3, (1, 1), ((0, 0), (0, 0)),
                                      dimension_numbers=dn)
        sc = sc + params["b3"][None, :, None, None]
    else:
        sc = x_nchw
    return jnp.maximum(y + sc, 0.0)


# ---------------------------------------------------------------------------
if __name__ == "__main__":
    key = jax.random.PRNGKey(0)
    N, Cin, H, W = 2, 4, 16, 16        # input_channels = 4
    Cmid = 8                           # num_channels = 8, use_1x1conv=True

    ks = jax.random.split(key, 7)
    x = jax.random.normal(ks[0], (N, Cin, H, W), jnp.float32)
    params = dict(
        w1=0.1 * jax.random.normal(ks[1], (3, 3, Cin, Cmid), jnp.float32),
        b1=0.1 * jax.random.normal(ks[2], (Cmid,), jnp.float32),
        w2=0.1 * jax.random.normal(ks[3], (3, 3, Cmid, Cmid), jnp.float32),
        b2=0.1 * jax.random.normal(ks[4], (Cmid,), jnp.float32),
        w3=0.1 * jax.random.normal(ks[5], (Cin, Cmid), jnp.float32),
        b3=0.1 * jax.random.normal(ks[6], (Cmid,), jnp.float32),
    )

    out = jax.block_until_ready(residual_forward(x, params, use_1x1conv=True))
    ref = jax.block_until_ready(residual_reference(x, params, use_1x1conv=True))

    assert out.shape == (N, Cmid, H, W), out.shape
    # bf16 MXU operands (f32 accumulate) -> compare against the f32 reference
    # with a bf16-appropriate tolerance.
    assert jnp.allclose(out, ref, rtol=5e-2, atol=5e-2), \
        f"max abs err {jnp.max(jnp.abs(out - ref))}"
    print("KERNEL_OK")
</pallas_src>

<mosaic_0001>
module attributes {stable_mosaic.version = 11 : i64} {
  func.func @kernel(%arg0: i32, %arg1: memref<1x16x512xf32, #tpu.memory_space<vmem>>, %arg2: memref<16x144xbf16, #tpu.memory_space<vmem>>, %arg3: memref<16x1xf32, #tpu.memory_space<vmem>>, %arg4: memref<16x144xbf16, #tpu.memory_space<vmem>>, %arg5: memref<16x1xf32, #tpu.memory_space<vmem>>, %arg6: memref<16x16xbf16, #tpu.memory_space<vmem>>, %arg7: memref<16x1xf32, #tpu.memory_space<vmem>>, %arg8: memref<1x16x512xf32, #tpu.memory_space<vmem>>, %arg9: memref<144x512xbf16, #tpu.memory_space<vmem>>) attributes {dimension_semantics = [#tpu.dimension_semantics<parallel>], iteration_bounds = array<i64: 1>, scalar_prefetch = 0 : i64, scratch_operands = 1 : i64, tpu.core_type = #tpu.core_type<tc>, window_params = [{transform_indices = @transform_0, window_bounds = array<i64: 1, 16, 512>}, {pipeline_mode = #tpu.pipeline_mode<synchronous>, transform_indices = @transform_1, window_bounds = array<i64: 16, 144>}, {pipeline_mode = #tpu.pipeline_mode<synchronous>, transform_indices = @transform_2, window_bounds = array<i64: 16, 1>}, {pipeline_mode = #tpu.pipeline_mode<synchronous>, transform_indices = @transform_3, window_bounds = array<i64: 16, 144>}, {pipeline_mode = #tpu.pipeline_mode<synchronous>, transform_indices = @transform_4, window_bounds = array<i64: 16, 1>}, {pipeline_mode = #tpu.pipeline_mode<synchronous>, transform_indices = @transform_5, window_bounds = array<i64: 16, 16>}, {pipeline_mode = #tpu.pipeline_mode<synchronous>, transform_indices = @transform_6, window_bounds = array<i64: 16, 1>}, {transform_indices = @transform_7, window_bounds = array<i64: 1, 16, 512>}]} {
    %c0 = arith.constant 0 : index
    %c0_0 = arith.constant 0 : index
    %c0_1 = arith.constant 0 : index
    %0 = vector.load %arg1[%c0, %c0_0, %c0_1] : memref<1x16x512xf32, #tpu.memory_space<vmem>>, vector<1x16x512xf32>
    %1 = vector.shape_cast %0 : vector<1x16x512xf32> to vector<16x512xf32>
    %2 = tpu.iota {dimensions = array<i32: 1>} : vector<1x512xi32>
    %c15_i32 = arith.constant 15 : i32
    %3 = vector.broadcast %c15_i32 : i32 to vector<1x512xi32>
    %4 = arith.andi %2, %3 : vector<1x512xi32>
    %c255_i32 = arith.constant 255 : i32
    %5 = vector.broadcast %c255_i32 : i32 to vector<1x512xi32>
    %6 = arith.andi %2, %5 : vector<1x512xi32>
    %c4_i32 = arith.constant 4 : i32
    %7 = vector.broadcast %c4_i32 : i32 to vector<1x512xi32>
    %8 = arith.shrsi %6, %7 : vector<1x512xi32>
    %c0_2 = arith.constant 0 : index
    %c0_3 = arith.constant 0 : index
    %9 = vector.load %arg2[%c0_2, %c0_3] : memref<16x144xbf16, #tpu.memory_space<vmem>>, vector<16x144xbf16>
    %c17_i32 = arith.constant 17 : i32
    %10 = tpu.dynamic_rotate %1 by %c17_i32 dim 1 : vector<16x512xf32>, i32 -> vector<16x512xf32>
    %c1_i32 = arith.constant 1 : i32
    %11 = vector.broadcast %c1_i32 : i32 to vector<1x512xi32>
    %12 = arith.cmpi sge, %8, %11 : vector<1x512xi32>
    %c1_i32_4 = arith.constant 1 : i32
    %13 = vector.broadcast %c1_i32_4 : i32 to vector<1x512xi32>
    %14 = arith.cmpi sge, %4, %13 : vector<1x512xi32>
    %15 = arith.andi %12, %14 : vector<1x512xi1>
    %cst = arith.constant 0.000000e+00 : f32
    %16 = vector.shape_cast %15 : vector<1x512xi1> to vector<1x512xi1>
    %17 = vector.broadcast %16 : vector<1x512xi1> to vector<16x512xi1>
    %18 = vector.broadcast %cst : f32 to vector<16x512xf32>
    %19 = arith.select %17, %10, %18 : vector<16x512xi1>, vector<16x512xf32>
    %20 = arith.truncf %19 : vector<16x512xf32> to vector<16x512xbf16>
    %c0_5 = arith.constant 0 : index
    %c0_6 = arith.constant 0 : index
    %21 = vector.load %arg9[%c0_5, %c0_6] : memref<144x512xbf16, #tpu.memory_space<vmem>>, vector<16x512xbf16>
    tpu.vector_store %arg9[%c0_5, %c0_6], %20 {strides = array<i32>} : memref<144x512xbf16, #tpu.memory_space<vmem>>, vector<16x512xbf16>,
    %c16_i32 = arith.constant 16 : i32
    %22 = tpu.dynamic_rotate %1 by %c16_i32 dim 1 : vector<16x512xf32>, i32 -> vector<16x512xf32>
    %c1_i32_7 = arith.constant 1 : i32
    %23 = vector.broadcast %c1_i32_7 : i32 to vector<1x512xi32>
    %24 = arith.cmpi sge, %8, %23 : vector<1x512xi32>
    %cst_8 = arith.constant 0.000000e+00 : f32
    %25 = vector.shape_cast %24 : vector<1x512xi1> to vector<1x512xi1>
    %26 = vector.broadcast %25 : vector<1x512xi1> to vector<16x512xi1>
    %27 = vector.broadcast %cst_8 : f32 to vector<16x512xf32>
    %28 = arith.select %26, %22, %27 : vector<16x512xi1>, vector<16x512xf32>
    %29 = arith.truncf %28 : vector<16x512xf32> to vector<16x512xbf16>
    %c16 = arith.constant 16 : index
    %c0_9 = arith.constant 0 : index
    %30 = vector.load %arg9[%c16, %c0_9] : memref<144x512xbf16, #tpu.memory_space<vmem>>, vector<16x512xbf16>
    tpu.vector_store %arg9[%c16, %c0_9], %29 {strides = array<i32>} : memref<144x512xbf16, #tpu.memory_space<vmem>>, vector<16x512xbf16>,
    %c15_i32_10 = arith.constant 15 : i32
    %31 = tpu.dynamic_rotate %1 by %c15_i32_10 dim 1 : vector<16x512xf32>, i32 -> vector<16x512xf32>
    %c1_i32_11 = arith.constant 1 : i32
    %32 = vector.broadcast %c1_i32_11 : i32 to vector<1x512xi32>
    %33 = arith.cmpi sge, %8, %32 : vector<1x512xi32>
    %c15_i32_12 = arith.constant 15 : i32
    %34 = vector.broadcast %c15_i32_12 : i32 to vector<1x512xi32>
    %35 = arith.cmpi slt, %4, %34 : vector<1x512xi32>
    %36 = arith.andi %33, %35 : vector<1x512xi1>
    %cst_13 = arith.constant 0.000000e+00 : f32
    %37 = vector.shape_cast %36 : vector<1x512xi1> to vector<1x512xi1>
    %38 = vector.broadcast %37 : vector<1x512xi1> to vector<16x512xi1>
    %39 = vector.broadcast %cst_13 : f32 to vector<16x512xf32>
    %40 = arith.select %38, %31, %39 : vector<16x512xi1>, vector<16x512xf32>
    %41 = arith.truncf %40 : vector<16x512xf32> to vector<16x512xbf16>
    %c32 = arith.constant 32 : index
    %c0_14 = arith.constant 0 : index
    %42 = vector.load %arg9[%c32, %c0_14] : memref<144x512xbf16, #tpu.memory_space<vmem>>, vector<16x512xbf16>
    tpu.vector_store %arg9[%c32, %c0_14], %41 {strides = array<i32>} : memref<144x512xbf16, #tpu.memory_space<vmem>>, vector<16x512xbf16>,
    %c1_i32_15 = arith.constant 1 : i32
    %43 = tpu.dynamic_rotate %1 by %c1_i32_15 dim 1 : vector<16x512xf32>, i32 -> vector<16x512xf32>
    %c1_i32_16 = arith.constant 1 : i32
    %44 = vector.broadcast %c1_i32_16 : i32 to vector<1x512xi32>
    %45 = arith.cmpi sge, %4, %44 : vector<1x512xi32>
    %cst_17 = arith.constant 0.000000e+00 : f32
    %46 = vector.shape_cast %45 : vector<1x512xi1> to vector<1x512xi1>
    %47 = vector.broadcast %46 : vector<1x512xi1> to vector<16x512xi1>
    %48 = vector.broadcast %cst_17 : f32 to vector<16x512xf32>
    %49 = arith.select %47, %43, %48 : vector<16x512xi1>, vector<16x512xf32>
    %50 = arith.truncf %49 : vector<16x512xf32> to vector<16x512xbf16>
    %c48 = arith.constant 48 : index
    %c0_18 = arith.constant 0 : index
    %51 = vector.load %arg9[%c48, %c0_18] : memref<144x512xbf16, #tpu.memory_space<vmem>>, vector<16x512xbf16>
    tpu.vector_store %arg9[%c48, %c0_18], %50 {strides = array<i32>} : memref<144x512xbf16, #tpu.memory_space<vmem>>, vector<16x512xbf16>,
    %52 = arith.truncf %1 : vector<16x512xf32> to vector<16x512xbf16>
    %c64 = arith.constant 64 : index
    %c0_19 = arith.constant 0 : index
    %53 = vector.load %arg9[%c64, %c0_19] : memref<144x512xbf16, #tpu.memory_space<vmem>>, vector<16x512xbf16>
    tpu.vector_store %arg9[%c64, %c0_19], %52 {strides = array<i32>} : memref<144x512xbf16, #tpu.memory_space<vmem>>, vector<16x512xbf16>,
    %c511_i32 = arith.constant 511 : i32
    %54 = tpu.dynamic_rotate %1 by %c511_i32 dim 1 : vector<16x512xf32>, i32 -> vector<16x512xf32>
    %c15_i32_20 = arith.constant 15 : i32
    %55 = vector.broadcast %c15_i32_20 : i32 to vector<1x512xi32>
    %56 = arith.cmpi slt, %4, %55 : vector<1x512xi32>
    %cst_21 = arith.constant 0.000000e+00 : f32
    %57 = vector.shape_cast %56 : vector<1x512xi1> to vector<1x512xi1>
    %58 = vector.broadcast %57 : vector<1x512xi1> to vector<16x512xi1>
    %59 = vector.broadcast %cst_21 : f32 to vector<16x512xf32>
    %60 = arith.select %58, %54, %59 : vector<16x512xi1>, vector<16x512xf32>
    %61 = arith.truncf %60 : vector<16x512xf32> to vector<16x512xbf16>
    %c80 = arith.constant 80 : index
    %c0_22 = arith.constant 0 : index
    %62 = vector.load %arg9[%c80, %c0_22] : memref<144x512xbf16, #tpu.memory_space<vmem>>, vector<16x512xbf16>
    tpu.vector_store %arg9[%c80, %c0_22], %61 {strides = array<i32>} : memref<144x512xbf16, #tpu.memory_space<vmem>>, vector<16x512xbf16>,
    %c497_i32 = arith.constant 497 : i32
    %63 = tpu.dynamic_rotate %1 by %c497_i32 dim 1 : vector<16x512xf32>, i32 -> vector<16x512xf32>
    %c15_i32_23 = arith.constant 15 : i32
    %64 = vector.broadcast %c15_i32_23 : i32 to vector<1x512xi32>
    %65 = arith.cmpi slt, %8, %64 : vector<1x512xi32>
    %c1_i32_24 = arith.constant 1 : i32
    %66 = vector.broadcast %c1_i32_24 : i32 to vector<1x512xi32>
    %67 = arith.cmpi sge, %4, %66 : vector<1x512xi32>
    %68 = arith.andi %65, %67 : vector<1x512xi1>
    %cst_25 = arith.constant 0.000000e+00 : f32
    %69 = vector.shape_cast %68 : vector<1x512xi1> to vector<1x512xi1>
    %70 = vector.broadcast %69 : vector<1x512xi1> to vector<16x512xi1>
    %71 = vector.broadcast %cst_25 : f32 to vector<16x512xf32>
    %72 = arith.select %70, %63, %71 : vector<16x512xi1>, vector<16x512xf32>
    %73 = arith.truncf %72 : vector<16x512xf32> to vector<16x512xbf16>
    %c96 = arith.constant 96 : index
    %c0_26 = arith.constant 0 : index
    %74 = vector.load %arg9[%c96, %c0_26] : memref<144x512xbf16, #tpu.memory_space<vmem>>, vector<16x512xbf16>
    tpu.vector_store %arg9[%c96, %c0_26], %73 {strides = array<i32>} : memref<144x512xbf16, #tpu.memory_space<vmem>>, vector<16x512xbf16>,
    %c496_i32 = arith.constant 496 : i32
    %75 = tpu.dynamic_rotate %1 by %c496_i32 dim 1 : vector<16x512xf32>, i32 -> vector<16x512xf32>
    %c15_i32_27 = arith.constant 15 : i32
    %76 = vector.broadcast %c15_i32_27 : i32 to vector<1x512xi32>
    %77 = arith.cmpi slt, %8, %76 : vector<1x512xi32>
    %cst_28 = arith.constant 0.000000e+00 : f32
    %78 = vector.shape_cast %77 : vector<1x512xi1> to vector<1x512xi1>
    %79 = vector.broadcast %78 : vector<1x512xi1> to vector<16x512xi1>
    %80 = vector.broadcast %cst_28 : f32 to vector<16x512xf32>
    %81 = arith.select %79, %75, %80 : vector<16x512xi1>, vector<16x512xf32>
    %82 = arith.truncf %81 : vector<16x512xf32> to vector<16x512xbf16>
    %c112 = arith.constant 112 : index
    %c0_29 = arith.constant 0 : index
    %83 = vector.load %arg9[%c112, %c0_29] : memref<144x512xbf16, #tpu.memory_space<vmem>>, vector<16x512xbf16>
    tpu.vector_store %arg9[%c112, %c0_29], %82 {strides = array<i32>} : memref<144x512xbf16, #tpu.memory_space<vmem>>, vector<16x512xbf16>,
    %c495_i32 = arith.constant 495 : i32
    %84 = tpu.dynamic_rotate %1 by %c495_i32 dim 1 : vector<16x512xf32>, i32 -> vector<16x512xf32>
    %c15_i32_30 = arith.constant 15 : i32
    %85 = vector.broadcast %c15_i32_30 : i32 to vector<1x512xi32>
    %86 = arith.cmpi slt, %8, %85 : vector<1x512xi32>
    %c15_i32_31 = arith.constant 15 : i32
    %87 = vector.broadcast %c15_i32_31 : i32 to vector<1x512xi32>
    %88 = arith.cmpi slt, %4, %87 : vector<1x512xi32>
    %89 = arith.andi %86, %88 : vector<1x512xi1>
    %cst_32 = arith.constant 0.000000e+00 : f32
    %90 = vector.shape_cast %89 : vector<1x512xi1> to vector<1x512xi1>
    %91 = vector.broadcast %90 : vector<1x512xi1> to vector<16x512xi1>
    %92 = vector.broadcast %cst_32 : f32 to vector<16x512xf32>
    %93 = arith.select %91, %84, %92 : vector<16x512xi1>, vector<16x512xf32>
    %94 = arith.truncf %93 : vector<16x512xf32> to vector<16x512xbf16>
    %c128 = arith.constant 128 : index
    %c0_33 = arith.constant 0 : index
    %95 = vector.load %arg9[%c128, %c0_33] : memref<144x512xbf16, #tpu.memory_space<vmem>>, vector<16x512xbf16>
    tpu.vector_store %arg9[%c128, %c0_33], %94 {strides = array<i32>} : memref<144x512xbf16, #tpu.memory_space<vmem>>, vector<16x512xbf16>,
    %c0_34 = arith.constant 0 : index
    %c0_35 = arith.constant 0 : index
    %96 = vector.load %arg9[%c0_34, %c0_35] : memref<144x512xbf16, #tpu.memory_space<vmem>>, vector<144x512xbf16>
    %cst_36 = arith.constant dense<0.000000e+00> : vector<16x512xf32>
    %97 = tpu.matmul %9, %96, %cst_36 {dimension_numbers = #tpu.dot_dimension_numbers<[1], [0], [0], [1], [0, 0, 1, 1], [], []>} : vector<16x144xbf16>, vector<144x512xbf16>, vector<16x512xf32> -> vector<16x512xf32>
    %c0_37 = arith.constant 0 : index
    %c0_38 = arith.constant 0 : index
    %98 = vector.load %arg3[%c0_37, %c0_38] : memref<16x1xf32, #tpu.memory_space<vmem>>, vector<16x1xf32>
    %99 = vector.broadcast %98 : vector<16x1xf32> to vector<16x512xf32>
    %100 = arith.addf %97, %99 : vector<16x512xf32>
    %cst_39 = arith.constant 0.000000e+00 : f32
    %101 = vector.broadcast %cst_39 : f32 to vector<16x512xf32>
    %102 = arith.maximumf %100, %101 : vector<16x512xf32>
    %c0_40 = arith.constant 0 : index
    %c0_41 = arith.constant 0 : index
    %103 = vector.load %arg6[%c0_40, %c0_41] : memref<16x16xbf16, #tpu.memory_space<vmem>>, vector<16x16xbf16>
    %104 = arith.truncf %1 : vector<16x512xf32> to vector<16x512xbf16>
    %cst_42 = arith.constant dense<0.000000e+00> : vector<16x512xf32>
    %105 = tpu.matmul %103, %104, %cst_42 {dimension_numbers = #tpu.dot_dimension_numbers<[1], [0], [0], [1], [0, 0, 1, 1], [], []>} : vector<16x16xbf16>, vector<16x512xbf16>, vector<16x512xf32> -> vector<16x512xf32>
    %c0_43 = arith.constant 0 : index
    %c0_44 = arith.constant 0 : index
    %106 = vector.load %arg7[%c0_43, %c0_44] : memref<16x1xf32, #tpu.memory_space<vmem>>, vector<16x1xf32>
    %107 = vector.broadcast %106 : vector<16x1xf32> to vector<16x512xf32>
    %108 = arith.addf %105, %107 : vector<16x512xf32>
    %c0_45 = arith.constant 0 : index
    %c0_46 = arith.constant 0 : index
    %109 = vector.load %arg4[%c0_45, %c0_46] : memref<16x144xbf16, #tpu.memory_space<vmem>>, vector<16x144xbf16>
    %c17_i32_47 = arith.constant 17 : i32
    %110 = tpu.dynamic_rotate %102 by %c17_i32_47 dim 1 : vector<16x512xf32>, i32 -> vector<16x512xf32>
    %c1_i32_48 = arith.constant 1 : i32
    %111 = vector.broadcast %c1_i32_48 : i32 to vector<1x512xi32>
    %112 = arith.cmpi sge, %8, %111 : vector<1x512xi32>
    %c1_i32_49 = arith.constant 1 : i32
    %113 = vector.broadcast %c1_i32_49 : i32 to vector<1x512xi32>
    %114 = arith.cmpi sge, %4, %113 : vector<1x512xi32>
    %115 = arith.andi %112, %114 : vector<1x512xi1>
    %cst_50 = arith.constant 0.000000e+00 : f32
    %116 = vector.shape_cast %115 : vector<1x512xi1> to vector<1x512xi1>
    %117 = vector.broadcast %116 : vector<1x512xi1> to vector<16x512xi1>
    %118 = vector.broadcast %cst_50 : f32 to vector<16x512xf32>
    %119 = arith.select %117, %110, %118 : vector<16x512xi1>, vector<16x512xf32>
    %120 = arith.truncf %119 : vector<16x512xf32> to vector<16x512xbf16>
    %c0_51 = arith.constant 0 : index
    %c0_52 = arith.constant 0 : index
    %121 = vector.load %arg9[%c0_51, %c0_52] : memref<144x512xbf16, #tpu.memory_space<vmem>>, vector<16x512xbf16>
    tpu.vector_store %arg9[%c0_51, %c0_52], %120 {strides = array<i32>} : memref<144x512xbf16, #tpu.memory_space<vmem>>, vector<16x512xbf16>,
    %c16_i32_53 = arith.constant 16 : i32
    %122 = tpu.dynamic_rotate %102 by %c16_i32_53 dim 1 : vector<16x512xf32>, i32 -> vector<16x512xf32>
    %c1_i32_54 = arith.constant 1 : i32
    %123 = vector.broadcast %c1_i32_54 : i32 to vector<1x512xi32>
    %124 = arith.cmpi sge, %8, %123 : vector<1x512xi32>
    %cst_55 = arith.constant 0.000000e+00 : f32
    %125 = vector.shape_cast %124 : vector<1x512xi1> to vector<1x512xi1>
    %126 = vector.broadcast %125 : vector<1x512xi1> to vector<16x512xi1>
    %127 = vector.broadcast %cst_55 : f32 to vector<16x512xf32>
    %128 = arith.select %126, %122, %127 : vector<16x512xi1>, vector<16x512xf32>
    %129 = arith.truncf %128 : vector<16x512xf32> to vector<16x512xbf16>
    %c16_56 = arith.constant 16 : index
    %c0_57 = arith.constant 0 : index
    %130 = vector.load %arg9[%c16_56, %c0_57] : memref<144x512xbf16, #tpu.memory_space<vmem>>, vector<16x512xbf16>
    tpu.vector_store %arg9[%c16_56, %c0_57], %129 {strides = array<i32>} : memref<144x512xbf16, #tpu.memory_space<vmem>>, vector<16x512xbf16>,
    %c15_i32_58 = arith.constant 15 : i32
    %131 = tpu.dynamic_rotate %102 by %c15_i32_58 dim 1 : vector<16x512xf32>, i32 -> vector<16x512xf32>
    %c1_i32_59 = arith.constant 1 : i32
    %132 = vector.broadcast %c1_i32_59 : i32 to vector<1x512xi32>
    %133 = arith.cmpi sge, %8, %132 : vector<1x512xi32>
    %c15_i32_60 = arith.constant 15 : i32
    %134 = vector.broadcast %c15_i32_60 : i32 to vector<1x512xi32>
    %135 = arith.cmpi slt, %4, %134 : vector<1x512xi32>
    %136 = arith.andi %133, %135 : vector<1x512xi1>
    %cst_61 = arith.constant 0.000000e+00 : f32
    %137 = vector.shape_cast %136 : vector<1x512xi1> to vector<1x512xi1>
    %138 = vector.broadcast %137 : vector<1x512xi1> to vector<16x512xi1>
    %139 = vector.broadcast %cst_61 : f32 to vector<16x512xf32>
    %140 = arith.select %138, %131, %139 : vector<16x512xi1>, vector<16x512xf32>
    %141 = arith.truncf %140 : vector<16x512xf32> to vector<16x512xbf16>
    %c32_62 = arith.constant 32 : index
    %c0_63 = arith.constant 0 : index
    %142 = vector.load %arg9[%c32_62, %c0_63] : memref<144x512xbf16, #tpu.memory_space<vmem>>, vector<16x512xbf16>
    tpu.vector_store %arg9[%c32_62, %c0_63], %141 {strides = array<i32>} : memref<144x512xbf16, #tpu.memory_space<vmem>>, vector<16x512xbf16>,
    %c1_i32_64 = arith.constant 1 : i32
    %143 = tpu.dynamic_rotate %102 by %c1_i32_64 dim 1 : vector<16x512xf32>, i32 -> vector<16x512xf32>
    %c1_i32_65 = arith.constant 1 : i32
    %144 = vector.broadcast %c1_i32_65 : i32 to vector<1x512xi32>
    %145 = arith.cmpi sge, %4, %144 : vector<1x512xi32>
    %cst_66 = arith.constant 0.000000e+00 : f32
    %146 = vector.shape_cast %145 : vector<1x512xi1> to vector<1x512xi1>
    %147 = vector.broadcast %146 : vector<1x512xi1> to vector<16x512xi1>
    %148 = vector.broadcast %cst_66 : f32 to vector<16x512xf32>
    %149 = arith.select %147, %143, %148 : vector<16x512xi1>, vector<16x512xf32>
    %150 = arith.truncf %149 : vector<16x512xf32> to vector<16x512xbf16>
    %c48_67 = arith.constant 48 : index
    %c0_68 = arith.constant 0 : index
    %151 = vector.load %arg9[%c48_67, %c0_68] : memref<144x512xbf16, #tpu.memory_space<vmem>>, vector<16x512xbf16>
    tpu.vector_store %arg9[%c48_67, %c0_68], %150 {strides = array<i32>} : memref<144x512xbf16, #tpu.memory_space<vmem>>, vector<16x512xbf16>,
    %152 = arith.truncf %102 : vector<16x512xf32> to vector<16x512xbf16>
    %c64_69 = arith.constant 64 : index
    %c0_70 = arith.constant 0 : index
    %153 = vector.load %arg9[%c64_69, %c0_70] : memref<144x512xbf16, #tpu.memory_space<vmem>>, vector<16x512xbf16>
    tpu.vector_store %arg9[%c64_69, %c0_70], %152 {strides = array<i32>} : memref<144x512xbf16, #tpu.memory_space<vmem>>, vector<16x512xbf16>,
    %c511_i32_71 = arith.constant 511 : i32
    %154 = tpu.dynamic_rotate %102 by %c511_i32_71 dim 1 : vector<16x512xf32>, i32 -> vector<16x512xf32>
    %c15_i32_72 = arith.constant 15 : i32
    %155 = vector.broadcast %c15_i32_72 : i32 to vector<1x512xi32>
    %156 = arith.cmpi slt, %4, %155 : vector<1x512xi32>
    %cst_73 = arith.constant 0.000000e+00 : f32
    %157 = vector.shape_cast %156 : vector<1x512xi1> to vector<1x512xi1>
    %158 = vector.broadcast %157 : vector<1x512xi1> to vector<16x512xi1>
    %159 = vector.broadcast %cst_73 : f32 to vector<16x512xf32>
    %160 = arith.select %158, %154, %159 : vector<16x512xi1>, vector<16x512xf32>
    %161 = arith.truncf %160 : vector<16x512xf32> to vector<16x512xbf16>
    %c80_74 = arith.constant 80 : index
    %c0_75 = arith.constant 0 : index
    %162 = vector.load %arg9[%c80_74, %c0_75] : memref<144x512xbf16, #tpu.memory_space<vmem>>, vector<16x512xbf16>
    tpu.vector_store %arg9[%c80_74, %c0_75], %161 {strides = array<i32>} : memref<144x512xbf16, #tpu.memory_space<vmem>>, vector<16x512xbf16>,
    %c497_i32_76 = arith.constant 497 : i32
    %163 = tpu.dynamic_rotate %102 by %c497_i32_76 dim 1 : vector<16x512xf32>, i32 -> vector<16x512xf32>
    %c15_i32_77 = arith.constant 15 : i32
    %164 = vector.broadcast %c15_i32_77 : i32 to vector<1x512xi32>
    %165 = arith.cmpi slt, %8, %164 : vector<1x512xi32>
    %c1_i32_78 = arith.constant 1 : i32
    %166 = vector.broadcast %c1_i32_78 : i32 to vector<1x512xi32>
    %167 = arith.cmpi sge, %4, %166 : vector<1x512xi32>
    %168 = arith.andi %165, %167 : vector<1x512xi1>
    %cst_79 = arith.constant 0.000000e+00 : f32
    %169 = vector.shape_cast %168 : vector<1x512xi1> to vector<1x512xi1>
    %170 = vector.broadcast %169 : vector<1x512xi1> to vector<16x512xi1>
    %171 = vector.broadcast %cst_79 : f32 to vector<16x512xf32>
    %172 = arith.select %170, %163, %171 : vector<16x512xi1>, vector<16x512xf32>
    %173 = arith.truncf %172 : vector<16x512xf32> to vector<16x512xbf16>
    %c96_80 = arith.constant 96 : index
    %c0_81 = arith.constant 0 : index
    %174 = vector.load %arg9[%c96_80, %c0_81] : memref<144x512xbf16, #tpu.memory_space<vmem>>, vector<16x512xbf16>
    tpu.vector_store %arg9[%c96_80, %c0_81], %173 {strides = array<i32>} : memref<144x512xbf16, #tpu.memory_space<vmem>>, vector<16x512xbf16>,
    %c496_i32_82 = arith.constant 496 : i32
    %175 = tpu.dynamic_rotate %102 by %c496_i32_82 dim 1 : vector<16x512xf32>, i32 -> vector<16x512xf32>
    %c15_i32_83 = arith.constant 15 : i32
    %176 = vector.broadcast %c15_i32_83 : i32 to vector<1x512xi32>
    %177 = arith.cmpi slt, %8, %176 : vector<1x512xi32>
    %cst_84 = arith.constant 0.000000e+00 : f32
    %178 = vector.shape_cast %177 : vector<1x512xi1> to vector<1x512xi1>
    %179 = vector.broadcast %178 : vector<1x512xi1> to vector<16x512xi1>
    %180 = vector.broadcast %cst_84 : f32 to vector<16x512xf32>
    %181 = arith.select %179, %175, %180 : vector<16x512xi1>, vector<16x512xf32>
    %182 = arith.truncf %181 : vector<16x512xf32> to vector<16x512xbf16>
    %c112_85 = arith.constant 112 : index
    %c0_86 = arith.constant 0 : index
    %183 = vector.load %arg9[%c112_85, %c0_86] : memref<144x512xbf16, #tpu.memory_space<vmem>>, vector<16x512xbf16>
    tpu.vector_store %arg9[%c112_85, %c0_86], %182 {strides = array<i32>} : memref<144x512xbf16, #tpu.memory_space<vmem>>, vector<16x512xbf16>,
    %c495_i32_87 = arith.constant 495 : i32
    %184 = tpu.dynamic_rotate %102 by %c495_i32_87 dim 1 : vector<16x512xf32>, i32 -> vector<16x512xf32>
    %c15_i32_88 = arith.constant 15 : i32
    %185 = vector.broadcast %c15_i32_88 : i32 to vector<1x512xi32>
    %186 = arith.cmpi slt, %8, %185 : vector<1x512xi32>
    %c15_i32_89 = arith.constant 15 : i32
    %187 = vector.broadcast %c15_i32_89 : i32 to vector<1x512xi32>
    %188 = arith.cmpi slt, %4, %187 : vector<1x512xi32>
    %189 = arith.andi %186, %188 : vector<1x512xi1>
    %cst_90 = arith.constant 0.000000e+00 : f32
    %190 = vector.shape_cast %189 : vector<1x512xi1> to vector<1x512xi1>
    %191 = vector.broadcast %190 : vector<1x512xi1> to vector<16x512xi1>
    %192 = vector.broadcast %cst_90 : f32 to vector<16x512xf32>
    %193 = arith.select %191, %184, %192 : vector<16x512xi1>, vector<16x512xf32>
    %194 = arith.truncf %193 : vector<16x512xf32> to vector<16x512xbf16>
    %c128_91 = arith.constant 128 : index
    %c0_92 = arith.constant 0 : index
    %195 = vector.load %arg9[%c128_91, %c0_92] : memref<144x512xbf16, #tpu.memory_space<vmem>>, vector<16x512xbf16>
    tpu.vector_store %arg9[%c128_91, %c0_92], %194 {strides = array<i32>} : memref<144x512xbf16, #tpu.memory_space<vmem>>, vector<16x512xbf16>,
    %c0_93 = arith.constant 0 : index
    %c0_94 = arith.constant 0 : index
    %196 = vector.load %arg9[%c0_93, %c0_94] : memref<144x512xbf16, #tpu.memory_space<vmem>>, vector<144x512xbf16>
    %cst_95 = arith.constant dense<0.000000e+00> : vector<16x512xf32>
    %197 = tpu.matmul %109, %196, %cst_95 {dimension_numbers = #tpu.dot_dimension_numbers<[1], [0], [0], [1], [0, 0, 1, 1], [], []>} : vector<16x144xbf16>, vector<144x512xbf16>, vector<16x512xf32> -> vector<16x512xf32>
    %c0_96 = arith.constant 0 : index
    %c0_97 = arith.constant 0 : index
    %198 = vector.load %arg5[%c0_96, %c0_97] : memref<16x1xf32, #tpu.memory_space<vmem>>, vector<16x1xf32>
    %199 = vector.broadcast %198 : vector<16x1xf32> to vector<16x512xf32>
    %200 = arith.addf %197, %199 : vector<16x512xf32>
    %201 = arith.addf %200, %108 : vector<16x512xf32>
    %cst_98 = arith.constant 0.000000e+00 : f32
    %202 = vector.broadcast %cst_98 : f32 to vector<16x512xf32>
    %203 = arith.maximumf %201, %202 : vector<16x512xf32>
    %c0_99 = arith.constant 0 : index
    %c0_100 = arith.constant 0 : index
    %c0_101 = arith.constant 0 : index
    %204 = vector.load %arg8[%c0_99, %c0_100, %c0_101] : memref<1x16x512xf32, #tpu.memory_space<vmem>>, vector<1x16x512xf32>
    %205 = vector.shape_cast %204 : vector<1x16x512xf32> to vector<16x512xf32>
    %206 = vector.shape_cast %203 : vector<16x512xf32> to vector<1x16x512xf32>
    tpu.vector_store %arg8[%c0_99, %c0_100, %c0_101], %206 {strides = array<i32>} : memref<1x16x512xf32, #tpu.memory_space<vmem>>, vector<1x16x512xf32>,
    return
  }
  func.func @transform_0(%arg0: i32) -> (i32, i32, i32) {
    %c0_i32 = arith.constant 0 : i32
    %c0_i32_0 = arith.constant 0 : i32
    %c0_i32_1 = arith.constant 0 : i32
    return %arg0, %c0_i32, %c0_i32_0 : i32, i32, i32
  }
  func.func @transform_1(%arg0: i32) -> (i32, i32) {
    %c0_i32 = arith.constant 0 : i32
    %c0_i32_0 = arith.constant 0 : i32
    %c0_i32_1 = arith.constant 0 : i32
    return %c0_i32, %c0_i32_0 : i32, i32
  }
  func.func @transform_2(%arg0: i32) -> (i32, i32) {
    %c0_i32 = arith.constant 0 : i32
    %c0_i32_0 = arith.constant 0 : i32
    %c0_i32_1 = arith.constant 0 : i32
    return %c0_i32, %c0_i32_0 : i32, i32
  }
  func.func @transform_3(%arg0: i32) -> (i32, i32) {
    %c0_i32 = arith.constant 0 : i32
    %c0_i32_0 = arith.constant 0 : i32
    %c0_i32_1 = arith.constant 0 : i32
    return %c0_i32, %c0_i32_0 : i32, i32
  }
  func.func @transform_4(%arg0: i32) -> (i32, i32) {
    %c0_i32 = arith.constant 0 : i32
    %c0_i32_0 = arith.constant 0 : i32
    %c0_i32_1 = arith.constant 0 : i32
    return %c0_i32, %c0_i32_0 : i32, i32
  }
  func.func @transform_5(%arg0: i32) -> (i32, i32) {
    %c0_i32 = arith.constant 0 : i32
    %c0_i32_0 = arith.constant 0 : i32
    %c0_i32_1 = arith.constant 0 : i32
    return %c0_i32, %c0_i32_0 : i32, i32
  }
  func.func @transform_6(%arg0: i32) -> (i32, i32) {
    %c0_i32 = arith.constant 0 : i32
    %c0_i32_0 = arith.constant 0 : i32
    %c0_i32_1 = arith.constant 0 : i32
    return %c0_i32, %c0_i32_0 : i32, i32
  }
  func.func @transform_7(%arg0: i32) -> (i32, i32, i32) {
    %c0_i32 = arith.constant 0 : i32
    %c0_i32_0 = arith.constant 0 : i32
    %c0_i32_1 = arith.constant 0 : i32
    return %arg0, %c0_i32, %c0_i32_0 : i32, i32, i32
  }
}

</mosaic_0001>

<llo_original>
// kernel: tpu_custom_call.1
$region0: #{tpu_custom_call.1}
  #allocation0 [shape = 'u32[]', space=smem, size = 0x4, offset = 0x4, fixed_abs, tag = 'smem constant byte address 0x4 - core index']
  #allocation1 [shape = 'u32[144,128]{1,0:T(1,128)}', space=vmem, size = 0x12000, scoped, tag = 'internal scratch']
  #allocation2 [shape = 'bf16[144,512]{1,0:T(16,128)(2,1)}', space=vmem, size = 0x24000, scoped, tag = 'scratch operand']
  %s0 = inlined_call_operand.hbm [shape: f32[1,16,512], index: 0, kind: input, shape index: {}]
  %s1 = inlined_call_operand.vmem [shape: bf16[16,144], index: 1, kind: input, shape index: {}]
  %s2 = inlined_call_operand.vmem [shape: f32[16,1], index: 2, kind: input, shape index: {}]
  %s3 = inlined_call_operand.vmem [shape: bf16[16,144], index: 3, kind: input, shape index: {}]
  %s4 = inlined_call_operand.vmem [shape: f32[16,1], index: 4, kind: input, shape index: {}]
  %s5 = inlined_call_operand.vmem [shape: bf16[16,16], index: 5, kind: input, shape index: {}]
  %s6 = inlined_call_operand.vmem [shape: f32[16,1], index: 6, kind: input, shape index: {}]
  %s7 = inlined_call_operand.hbm [shape: f32[1,16,512], index: 7, kind: output, shape index: {}]
  %s8 = sld [smem:[#allocation0]]
  $region42: #{tpu_custom_call.1} parent=0
    _
  %s10 = ssub.s32 1, %s8
  %s11 = scalar_select 0, %s10, %s8
  $region1: #{tpu_custom_call.1} parent=0
    #allocation3 [shape = 'u8[32768]{0}', space=vmem, size = 0x8000, scoped, tag = 'input window, operand 0, single buffered']
    #allocation4 [shape = 's32[1]{0}', space=sflag, size = 0x4, scoped, tag = 'scoped memory for tpu_custom_call.1']
    #allocation5 [shape = 's32[1]{0}', space=sflag, size = 0x4, scoped, tag = 'scoped memory for tpu_custom_call.1']
    #allocation6 [shape = 'u8[32768]{0}', space=vmem, size = 0x8000, scoped, tag = 'output window, operand 0, single buffered']
    %12 = vsyncpa [#allocation4], 0
    %13 = vsyncpa [#allocation5], 0
    // Predicated region
    $region2: #{tpu_custom_call.1} parent=1 // pred_check
      _
    $region3: #{tpu_custom_call.1} parent=1 // pred_check_branch
      %15 = sbr.rel (0) target = $region5
    $region4: #{tpu_custom_call.1} parent=1 // pred_region
      %s17 = ssub.s32 1024, 1024
      %18 = vsyncadd [#allocation4], %s17
      %s19 = sshll.u32 [#allocation3], 4
      %s20 = int_to_ptr.vmem [resolvable:$true] %s19
      %25 = dma.hbm_to_vmem [thread:$0]  %s0, 1024, %s20, [#allocation4], 512, 512, 32
    $region5: #{tpu_custom_call.1} parent=1 // pred_fallthru
      _
    // Predicated region
    $region6: #{tpu_custom_call.1} parent=1 // pred_check
      _
    $region7: #{tpu_custom_call.1} parent=1 // pred_check_branch
      %27 = sbr.rel (0) target = $region9
    $region8: #{tpu_custom_call.1} parent=1 // pred_region
      _
    $region9: #{tpu_custom_call.1} parent=1 // pred_fallthru
      _
    // Predicated region
    $region10: #{tpu_custom_call.1} parent=1 // pred_check
      _
    $region11: #{tpu_custom_call.1} parent=1 // pred_check_branch
      %29 = sbr.rel (0) target = $region13
    $region12: #{tpu_custom_call.1} parent=1 // pred_region
      _
    $region13: #{tpu_custom_call.1} parent=1 // pred_fallthru
      _
    // Predicated region
    $region14: #{tpu_custom_call.1} parent=1 // pred_check
      _
    $region15: #{tpu_custom_call.1} parent=1 // pred_check_branch
      %31 = sbr.rel (0) target = $region17
    $region16: #{tpu_custom_call.1} parent=1 // pred_region
      _
    $region17: #{tpu_custom_call.1} parent=1 // pred_fallthru
      _
    // Predicated region
    $region18: #{tpu_custom_call.1} parent=1 // pred_check
      _
    $region19: #{tpu_custom_call.1} parent=1 // pred_check_branch
      %33 = sbr.rel (0) target = $region21
    $region20: #{tpu_custom_call.1} parent=1 // pred_region
      _
    $region21: #{tpu_custom_call.1} parent=1 // pred_fallthru
      _
    // Predicated region
    $region22: #{tpu_custom_call.1} parent=1 // pred_check
      _
    $region23: #{tpu_custom_call.1} parent=1 // pred_check_branch
      %35 = sbr.rel (0) target = $region25
    $region24: #{tpu_custom_call.1} parent=1 // pred_region
      _
    $region25: #{tpu_custom_call.1} parent=1 // pred_fallthru
      _
    // Predicated region
    $region26: #{tpu_custom_call.1} parent=1 // pred_check
      _
    $region27: #{tpu_custom_call.1} parent=1 // pred_check_branch
      %37 = sbr.rel (0) target = $region29
    $region28: #{tpu_custom_call.1} parent=1 // pred_region
      _
    $region29: #{tpu_custom_call.1} parent=1 // pred_fallthru
      _
    // Predicated region
    $region30: #{tpu_custom_call.1} parent=1 // pred_check
      _
    $region31: #{tpu_custom_call.1} parent=1 // pred_check_branch
      %39 = sbr.rel (0) target = $region33
    $region32: #{tpu_custom_call.1} parent=1 // pred_region
      %40 = dma.done [#allocation4], 1024
    $region33: #{tpu_custom_call.1} parent=1 // pred_fallthru
      _
    %v42 = vld [vmem:[#allocation3] sm:$0xff]
    %v43 = vld [vmem:[#allocation3 + $0x8] sm:$0xff]
    %v44 = vld [vmem:[#allocation3 + $0x10] sm:$0xff]
    %v45 = vld [vmem:[#allocation3 + $0x18] sm:$0xff]
    %v46 = vld [vmem:[#allocation3 + $0x20] sm:$0xff]
    %v47 = vld [vmem:[#allocation3 + $0x28] sm:$0xff]
    %v48 = vld [vmem:[#allocation3 + $0x30] sm:$0xff]
    %v49 = vld [vmem:[#allocation3 + $0x38] sm:$0xff]
    %v50 = vlaneseq
    %v51 = vand.u32 %v50, 127
    %v52 = vadd.s32 %v51, 128
    %v53 = vadd.s32 %v51, 256
    %v54 = vadd.s32 %v51, 384
    %v55 = vand.u32 %v51, 15
    %v56 = vand.u32 %v52, 15
    %v57 = vand.u32 %v53, 15
    %v58 = vand.u32 %v54, 15
    %v59 = vand.u32 %v51, 255
    %v60 = vand.u32 %v52, 255
    %v61 = vand.u32 %v53, 255
    %v62 = vand.u32 %v54, 255
    %v63 = vshra.s32 %v59, 4
    %v64 = vshra.s32 %v60, 4
    %v65 = vshra.s32 %v61, 4
    %v66 = vshra.s32 %v62, 4
    %v67 = vld [vmem:[%s1] sm:$0xff]
    %v68 = vld [vmem:[%s1 + $0x8] sm:$0xff]
    %69 = vrot.lane.b32.xlu0 %v42, 17
    %v70 = vpop.permute.xlu0 %69
    %71 = vrot.lane.b32.xlu0 %v46, 17
    %v72 = vpop.permute.xlu0 %71
    %73 = vrot.lane.b32.xlu0 %v43, 17
    %v74 = vpop.permute.xlu0 %73
    %75 = vrot.lane.b32.xlu0 %v47, 17
    %v76 = vpop.permute.xlu0 %75
    %77 = vrot.lane.b32.xlu0 %v44, 17
    %v78 = vpop.permute.xlu0 %77
    %79 = vrot.lane.b32.xlu0 %v48, 17
    %v80 = vpop.permute.xlu0 %79
    %81 = vrot.lane.b32.xlu0 %v45, 17
    %v82 = vpop.permute.xlu0 %81
    %83 = vrot.lane.b32.xlu0 %v49, 17
    %v84 = vpop.permute.xlu0 %83
    %vm85 = vcmp.lt.s32.totalorder %v51, 17
    %v86 = vsel %vm85, %v78, %v82
    %v87 = vsel %vm85, %v80, %v84
    %v88 = vsel %vm85, %v74, %v78
    %v89 = vsel %vm85, %v76, %v80
    %v90 = vsel %vm85, %v70, %v74
    %v91 = vsel %vm85, %v72, %v76
    %v92 = vsel %vm85, %v82, %v70
    %v93 = vsel %vm85, %v84, %v72
    %vm94 = vcmp.ge.s32.totalorder %v63, 1
    %vm95 = vcmp.ge.s32.totalorder %v64, 1
    %vm96 = vcmp.ge.s32.totalorder %v65, 1
    %vm97 = vcmp.ge.s32.totalorder %v66, 1
    %vm98 = vcmp.ge.s32.totalorder %v55, 1
    %vm99 = vcmp.ge.s32.totalorder %v56, 1
    %vm100 = vcmp.ge.s32.totalorder %v57, 1
    %vm101 = vcmp.ge.s32.totalorder %v58, 1
    %vm102 = vmand %vm94, %vm98
    %vm103 = vmand %vm95, %vm99
    %vm104 = vmand %vm96, %vm100
    %vm105 = vmand %vm97, %vm101
    %v106 = vsel %vm102, 1, 0
    %v107 = vsel %vm103, 1, 0
    %v108 = vsel %vm104, 1, 0
    %v109 = vsel %vm105, 1, 0
    %vm110 = vcmp.eq.s32.totalorder %v106, 1
    %vm111 = vcmp.eq.s32.totalorder %v107, 1
    %vm112 = vcmp.eq.s32.totalorder %v108, 1
    %vm113 = vcmp.eq.s32.totalorder %v109, 1
    %v114 = vsel %vm110, %v92, 0.0
    %v115 = vsel %vm111, %v90, 0.0
    %v116 = vsel %vm112, %v88, 0.0
    %v117 = vsel %vm113, %v86, 0.0
    %v118 = vsel %vm110, %v93, 0.0
    %v119 = vsel %vm111, %v91, 0.0
    %v120 = vsel %vm112, %v89, 0.0
    %v121 = vsel %vm113, %v87, 0.0
    %v122 = vpack.c.bf16 %v118, %v114
    %v123 = vpack.c.bf16 %v119, %v115
    %v124 = vpack.c.bf16 %v120, %v116
    %v125 = vpack.c.bf16 %v121, %v117
    %126 = vst [vmem:[#allocation2] sm:$0xff] %v122
    %127 = vst [vmem:[#allocation2 + $0x8] sm:$0xff] %v123
    %128 = vst [vmem:[#allocation2 + $0x10] sm:$0xff] %v124
    %129 = vst [vmem:[#allocation2 + $0x18] sm:$0xff] %v125
    %130 = vrot.lane.b32.xlu0 %v42, 16
    %v131 = vpop.permute.xlu0 %130
    %132 = vrot.lane.b32.xlu0 %v46, 16
    %v133 = vpop.permute.xlu0 %132
    %134 = vrot.lane.b32.xlu0 %v43, 16
    %v135 = vpop.permute.xlu0 %134
    %136 = vrot.lane.b32.xlu0 %v47, 16
    %v137 = vpop.permute.xlu0 %136
    %138 = vrot.lane.b32.xlu0 %v44, 16
    %v139 = vpop.permute.xlu0 %138
    %140 = vrot.lane.b32.xlu0 %v48, 16
    %v141 = vpop.permute.xlu0 %140
    %142 = vrot.lane.b32.xlu0 %v45, 16
    %v143 = vpop.permute.xlu0 %142
    %144 = vrot.lane.b32.xlu0 %v49, 16
    %v145 = vpop.permute.xlu0 %144
    %vm146 = vcmp.lt.s32.totalorder %v51, 16
    %v147 = vsel %vm146, %v139, %v143
    %v148 = vsel %vm146, %v141, %v145
    %v149 = vsel %vm146, %v135, %v139
    %v150 = vsel %vm146, %v137, %v141
    %v151 = vsel %vm146, %v131, %v135
    %v152 = vsel %vm146, %v133, %v137
    %v153 = vsel %vm146, %v143, %v131
    %v154 = vsel %vm146, %v145, %v133
    %v155 = vsel %vm94, 1, 0
    %v156 = vsel %vm95, 1, 0
    %v157 = vsel %vm96, 1, 0
    %v158 = vsel %vm97, 1, 0
    %vm159 = vcmp.eq.s32.totalorder %v155, 1
    %vm160 = vcmp.eq.s32.totalorder %v156, 1
    %vm161 = vcmp.eq.s32.totalorder %v157, 1
    %vm162 = vcmp.eq.s32.totalorder %v158, 1
    %v163 = vsel %vm159, %v153, 0.0
    %v164 = vsel %vm160, %v151, 0.0
    %v165 = vsel %vm161, %v149, 0.0
    %v166 = vsel %vm162, %v147, 0.0
    %v167 = vsel %vm159, %v154, 0.0
    %v168 = vsel %vm160, %v152, 0.0
    %v169 = vsel %vm161, %v150, 0.0
    %v170 = vsel %vm162, %v148, 0.0
    %v171 = vpack.c.bf16 %v167, %v163
    %v172 = vpack.c.bf16 %v168, %v164
    %v173 = vpack.c.bf16 %v169, %v165
    %v174 = vpack.c.bf16 %v170, %v166
    %175 = vst [vmem:[#allocation2 + $0x20] sm:$0xff] %v171
    %176 = vst [vmem:[#allocation2 + $0x28] sm:$0xff] %v172
    %177 = vst [vmem:[#allocation2 + $0x30] sm:$0xff] %v173
    %178 = vst [vmem:[#allocation2 + $0x38] sm:$0xff] %v174
    %179 = vrot.lane.b32.xlu0 %v42, 15
    %v180 = vpop.permute.xlu0 %179
    %181 = vrot.lane.b32.xlu0 %v46, 15
    %v182 = vpop.permute.xlu0 %181
    %183 = vrot.lane.b32.xlu0 %v43, 15
    %v184 = vpop.permute.xlu0 %183
    %185 = vrot.lane.b32.xlu0 %v47, 15
    %v186 = vpop.permute.xlu0 %185
    %187 = vrot.lane.b32.xlu0 %v44, 15
    %v188 = vpop.permute.xlu0 %187
    %189 = vrot.lane.b32.xlu0 %v48, 15
    %v190 = vpop.permute.xlu0 %189
    %191 = vrot.lane.b32.xlu0 %v45, 15
    %v192 = vpop.permute.xlu0 %191
    %193 = vrot.lane.b32.xlu0 %v49, 15
    %v194 = vpop.permute.xlu0 %193
    %vm195 = vcmp.lt.s32.totalorder %v51, 15
    %v196 = vsel %vm195, %v188, %v192
    %v197 = vsel %vm195, %v190, %v194
    %v198 = vsel %vm195, %v184, %v188
    %v199 = vsel %vm195, %v186, %v190
    %v200 = vsel %vm195, %v180, %v184
    %v201 = vsel %vm195, %v182, %v186
    %v202 = vsel %vm195, %v192, %v180
    %v203 = vsel %vm195, %v194, %v182
    %vm204 = vcmp.lt.s32.totalorder %v55, 15
    %vm205 = vcmp.lt.s32.totalorder %v56, 15
    %vm206 = vcmp.lt.s32.totalorder %v57, 15
    %vm207 = vcmp.lt.s32.totalorder %v58, 15
    %vm208 = vmand %vm94, %vm204
    %vm209 = vmand %vm95, %vm205
    %vm210 = vmand %vm96, %vm206
    %vm211 = vmand %vm97, %vm207
    %v212 = vsel %vm208, 1, 0
    %v213 = vsel %vm209, 1, 0
    %v214 = vsel %vm210, 1, 0
    %v215 = vsel %vm211, 1, 0
    %vm216 = vcmp.eq.s32.totalorder %v212, 1
    %vm217 = vcmp.eq.s32.totalorder %v213, 1
    %vm218 = vcmp.eq.s32.totalorder %v214, 1
    %vm219 = vcmp.eq.s32.totalorder %v215, 1
    %v220 = vsel %vm216, %v202, 0.0
    %v221 = vsel %vm217, %v200, 0.0
    %v222 = vsel %vm218, %v198, 0.0
    %v223 = vsel %vm219, %v196, 0.0
    %v224 = vsel %vm216, %v203, 0.0
    %v225 = vsel %vm217, %v201, 0.0
    %v226 = vsel %vm218, %v199, 0.0
    %v227 = vsel %vm219, %v197, 0.0
    %v228 = vpack.c.bf16 %v224, %v220
    %v229 = vpack.c.bf16 %v225, %v221
    %v230 = vpack.c.bf16 %v226, %v222
    %v231 = vpack.c.bf16 %v227, %v223
    %232 = vst [vmem:[#allocation2 + $0x40] sm:$0xff] %v228
    %233 = vst [vmem:[#allocation2 + $0x48] sm:$0xff] %v229
    %234 = vst [vmem:[#allocation2 + $0x50] sm:$0xff] %v230
    %235 = vst [vmem:[#allocation2 + $0x58] sm:$0xff] %v231
    %236 = vrot.lane.b32.xlu0 %v42, 1
    %v237 = vpop.permute.xlu0 %236
    %238 = vrot.lane.b32.xlu0 %v46, 1
    %v239 = vpop.permute.xlu0 %238
    %240 = vrot.lane.b32.xlu0 %v43, 1
    %v241 = vpop.permute.xlu0 %240
    %242 = vrot.lane.b32.xlu0 %v47, 1
    %v243 = vpop.permute.xlu0 %242
    %244 = vrot.lane.b32.xlu0 %v44, 1
    %v245 = vpop.permute.xlu0 %244
    %246 = vrot.lane.b32.xlu0 %v48, 1
    %v247 = vpop.permute.xlu0 %246
    %248 = vrot.lane.b32.xlu0 %v45, 1
    %v249 = vpop.permute.xlu0 %248
    %250 = vrot.lane.b32.xlu0 %v49, 1
    %v251 = vpop.permute.xlu0 %250
    %vm252 = vcmp.lt.s32.totalorder %v51, 1
    %v253 = vsel %vm252, %v245, %v249
    %v254 = vsel %vm252, %v247, %v251
    %v255 = vsel %vm252, %v241, %v245
    %v256 = vsel %vm252, %v243, %v247
    %v257 = vsel %vm252, %v237, %v241
    %v258 = vsel %vm252, %v239, %v243
    %v259 = vsel %vm252, %v249, %v237
    %v260 = vsel %vm252, %v251, %v239
    %v261 = vsel %vm98, 1, 0
    %v262 = vsel %vm99, 1, 0
    %v263 = vsel %vm100, 1, 0
    %v264 = vsel %vm101, 1, 0
    %vm265 = vcmp.eq.s32.totalorder %v261, 1
    %vm266 = vcmp.eq.s32.totalorder %v262, 1
    %vm267 = vcmp.eq.s32.totalorder %v263, 1
    %vm268 = vcmp.eq.s32.totalorder %v264, 1
    %v269 = vsel %vm265, %v259, 0.0
    %v270 = vsel %vm266, %v257, 0.0
    %v271 = vsel %vm267, %v255, 0.0
    %v272 = vsel %vm268, %v253, 0.0
    %v273 = vsel %vm265, %v260, 0.0
    %v274 = vsel %vm266, %v258, 0.0
    %v275 = vsel %vm267, %v256, 0.0
    %v276 = vsel %vm268, %v254, 0.0
    %v277 = vpack.c.bf16 %v273, %v269
    %v278 = vpack.c.bf16 %v274, %v270
    %v279 = vpack.c.bf16 %v275, %v271
    %v280 = vpack.c.bf16 %v276, %v272
    %281 = vst [vmem:[#allocation2 + $0x60] sm:$0xff] %v277
    %282 = vst [vmem:[#allocation2 + $0x68] sm:$0xff] %v278
    %283 = vst [vmem:[#allocation2 + $0x70] sm:$0xff] %v279
    %284 = vst [vmem:[#allocation2 + $0x78] sm:$0xff] %v280
    %v285 = vpack.c.bf16 %v46, %v42
    %v286 = vpack.c.bf16 %v47, %v43
    %v287 = vpack.c.bf16 %v48, %v44
    %v288 = vpack.c.bf16 %v49, %v45
    %289 = vst [vmem:[#allocation2 + $0x80] sm:$0xff] %v285
    %290 = vst [vmem:[#allocation2 + $0x88] sm:$0xff] %v286
    %291 = vst [vmem:[#allocation2 + $0x90] sm:$0xff] %v287
    %292 = vst [vmem:[#allocation2 + $0x98] sm:$0xff] %v288
    %293 = vrot.lane.b32.xlu0 %v42, 127
    %v294 = vpop.permute.xlu0 %293
    %295 = vrot.lane.b32.xlu0 %v46, 127
    %v296 = vpop.permute.xlu0 %295
    %297 = vrot.lane.b32.xlu0 %v43, 127
    %v298 = vpop.permute.xlu0 %297
    %299 = vrot.lane.b32.xlu0 %v47, 127
    %v300 = vpop.permute.xlu0 %299
    %301 = vrot.lane.b32.xlu0 %v44, 127
    %v302 = vpop.permute.xlu0 %301
    %303 = vrot.lane.b32.xlu0 %v48, 127
    %v304 = vpop.permute.xlu0 %303
    %305 = vrot.lane.b32.xlu0 %v45, 127
    %v306 = vpop.permute.xlu0 %305
    %307 = vrot.lane.b32.xlu0 %v49, 127
    %v308 = vpop.permute.xlu0 %307
    %vm309 = vcmp.lt.s32.totalorder %v51, 127
    %v310 = vsel %vm309, %v302, %v306
    %v311 = vsel %vm309, %v304, %v308
    %v312 = vsel %vm309, %v298, %v302
    %v313 = vsel %vm309, %v300, %v304
    %v314 = vsel %vm309, %v294, %v298
    %v315 = vsel %vm309, %v296, %v300
    %v316 = vsel %vm309, %v306, %v294
    %v317 = vsel %vm309, %v308, %v296
    %v318 = vsel %vm204, 1, 0
    %v319 = vsel %vm205, 1, 0
    %v320 = vsel %vm206, 1, 0
    %v321 = vsel %vm207, 1, 0
    %vm322 = vcmp.eq.s32.totalorder %v318, 1
    %vm323 = vcmp.eq.s32.totalorder %v319, 1
    %vm324 = vcmp.eq.s32.totalorder %v320, 1
    %vm325 = vcmp.eq.s32.totalorder %v321, 1
    %v326 = vsel %vm322, %v314, 0.0
    %v327 = vsel %vm323, %v312, 0.0
    %v328 = vsel %vm324, %v310, 0.0
    %v329 = vsel %vm325, %v316, 0.0
    %v330 = vsel %vm322, %v315, 0.0
    %v331 = vsel %vm323, %v313, 0.0
    %v332 = vsel %vm324, %v311, 0.0
    %v333 = vsel %vm325, %v317, 0.0
    %v334 = vpack.c.bf16 %v330, %v326
    %v335 = vpack.c.bf16 %v331, %v327
    %v336 = vpack.c.bf16 %v332, %v328
    %v337 = vpack.c.bf16 %v333, %v329
    %338 = vst [vmem:[#allocation2 + $0xa0] sm:$0xff] %v334
    %339 = vst [vmem:[#allocation2 + $0xa8] sm:$0xff] %v335
    %340 = vst [vmem:[#allocation2 + $0xb0] sm:$0xff] %v336
    %341 = vst [vmem:[#allocation2 + $0xb8] sm:$0xff] %v337
    %342 = vrot.lane.b32.xlu0 %v42, 113
    %v343 = vpop.permute.xlu0 %342
    %344 = vrot.lane.b32.xlu0 %v46, 113
    %v345 = vpop.permute.xlu0 %344
    %346 = vrot.lane.b32.xlu0 %v43, 113
    %v347 = vpop.permute.xlu0 %346
    %348 = vrot.lane.b32.xlu0 %v47, 113
    %v349 = vpop.permute.xlu0 %348
    %350 = vrot.lane.b32.xlu0 %v44, 113
    %v351 = vpop.permute.xlu0 %350
    %352 = vrot.lane.b32.xlu0 %v48, 113
    %v353 = vpop.permute.xlu0 %352
    %354 = vrot.lane.b32.xlu0 %v45, 113
    %v355 = vpop.permute.xlu0 %354
    %356 = vrot.lane.b32.xlu0 %v49, 113
    %v357 = vpop.permute.xlu0 %356
    %vm358 = vcmp.lt.s32.totalorder %v51, 113
    %v359 = vsel %vm358, %v351, %v355
    %v360 = vsel %vm358, %v353, %v357
    %v361 = vsel %vm358, %v347, %v351
    %v362 = vsel %vm358, %v349, %v353
    %v363 = vsel %vm358, %v343, %v347
    %v364 = vsel %vm358, %v345, %v349
    %v365 = vsel %vm358, %v355, %v343
    %v366 = vsel %vm358, %v357, %v345
    %vm367 = vcmp.lt.s32.totalorder %v63, 15
    %vm368 = vcmp.lt.s32.totalorder %v64, 15
    %vm369 = vcmp.lt.s32.totalorder %v65, 15
    %vm370 = vcmp.lt.s32.totalorder %v66, 15
    %vm371 = vmand %vm367, %vm98
    %vm372 = vmand %vm368, %vm99
    %vm373 = vmand %vm369, %vm100
    %vm374 = vmand %vm370, %vm101
    %v375 = vsel %vm371, 1, 0
    %v376 = vsel %vm372, 1, 0
    %v377 = vsel %vm373, 1, 0
    %v378 = vsel %vm374, 1, 0
    %vm379 = vcmp.eq.s32.totalorder %v375, 1
    %vm380 = vcmp.eq.s32.totalorder %v376, 1
    %vm381 = vcmp.eq.s32.totalorder %v377, 1
    %vm382 = vcmp.eq.s32.totalorder %v378, 1
    %v383 = vsel %vm379, %v363, 0.0
    %v384 = vsel %vm380, %v361, 0.0
    %v385 = vsel %vm381, %v359, 0.0
    %v386 = vsel %vm382, %v365, 0.0
    %v387 = vsel %vm379, %v364, 0.0
    %v388 = vsel %vm380, %v362, 0.0
    %v389 = vsel %vm381, %v360, 0.0
    %v390 = vsel %vm382, %v366, 0.0
    %v391 = vpack.c.bf16 %v387, %v383
    %v392 = vpack.c.bf16 %v388, %v384
    %v393 = vpack.c.bf16 %v389, %v385
    %v394 = vpack.c.bf16 %v390, %v386
    %395 = vst [vmem:[#allocation2 + $0xc0] sm:$0xff] %v391
    %396 = vst [vmem:[#allocation2 + $0xc8] sm:$0xff] %v392
    %397 = vst [vmem:[#allocation2 + $0xd0] sm:$0xff] %v393
    %398 = vst [vmem:[#allocation2 + $0xd8] sm:$0xff] %v394
    %399 = vrot.lane.b32.xlu0 %v42, 112
    %v400 = vpop.permute.xlu0 %399
    %401 = vrot.lane.b32.xlu0 %v46, 112
    %v402 = vpop.permute.xlu0 %401
    %403 = vrot.lane.b32.xlu0 %v43, 112
    %v404 = vpop.permute.xlu0 %403
    %405 = vrot.lane.b32.xlu0 %v47, 112
    %v406 = vpop.permute.xlu0 %405
    %407 = vrot.lane.b32.xlu0 %v44, 112
    %v408 = vpop.permute.xlu0 %407
    %409 = vrot.lane.b32.xlu0 %v48, 112
    %v410 = vpop.permute.xlu0 %409
    %411 = vrot.lane.b32.xlu0 %v45, 112
    %v412 = vpop.permute.xlu0 %411
    %413 = vrot.lane.b32.xlu0 %v49, 112
    %v414 = vpop.permute.xlu0 %413
    %vm415 = vcmp.lt.s32.totalorder %v51, 112
    %v416 = vsel %vm415, %v408, %v412
    %v417 = vsel %vm415, %v410, %v414
    %v418 = vsel %vm415, %v404, %v408
    %v419 = vsel %vm415, %v406, %v410
    %v420 = vsel %vm415, %v400, %v404
    %v421 = vsel %vm415, %v402, %v406
    %v422 = vsel %vm415, %v412, %v400
    %v423 = vsel %vm415, %v414, %v402
    %v424 = vsel %vm367, 1, 0
    %v425 = vsel %vm368, 1, 0
    %v426 = vsel %vm369, 1, 0
    %v427 = vsel %vm370, 1, 0
    %vm428 = vcmp.eq.s32.totalorder %v424, 1
    %vm429 = vcmp.eq.s32.totalorder %v425, 1
    %vm430 = vcmp.eq.s32.totalorder %v426, 1
    %vm431 = vcmp.eq.s32.totalorder %v427, 1
    %v432 = vsel %vm428, %v420, 0.0
    %v433 = vsel %vm429, %v418, 0.0
    %v434 = vsel %vm430, %v416, 0.0
    %v435 = vsel %vm431, %v422, 0.0
    %v436 = vsel %vm428, %v421, 0.0
    %v437 = vsel %vm429, %v419, 0.0
    %v438 = vsel %vm430, %v417, 0.0
    %v439 = vsel %vm431, %v423, 0.0
    %v440 = vpack.c.bf16 %v436, %v432
    %v441 = vpack.c.bf16 %v437, %v433
    %v442 = vpack.c.bf16 %v438, %v434
    %v443 = vpack.c.bf16 %v439, %v435
    %444 = vst [vmem:[#allocation2 + $0xe0] sm:$0xff] %v440
    %445 = vst [vmem:[#allocation2 + $0xe8] sm:$0xff] %v441
    %446 = vst [vmem:[#allocation2 + $0xf0] sm:$0xff] %v442
    %447 = vst [vmem:[#allocation2 + $0xf8] sm:$0xff] %v443
    %448 = vrot.lane.b32.xlu0 %v42, 111
    %v449 = vpop.permute.xlu0 %448
    %450 = vrot.lane.b32.xlu0 %v46, 111
    %v451 = vpop.permute.xlu0 %450
    %452 = vrot.lane.b32.xlu0 %v43, 111
    %v453 = vpop.permute.xlu0 %452
    %454 = vrot.lane.b32.xlu0 %v47, 111
    %v455 = vpop.permute.xlu0 %454
    %456 = vrot.lane.b32.xlu0 %v44, 111
    %v457 = vpop.permute.xlu0 %456
    %458 = vrot.lane.b32.xlu0 %v48, 111
    %v459 = vpop.permute.xlu0 %458
    %460 = vrot.lane.b32.xlu0 %v45, 111
    %v461 = vpop.permute.xlu0 %460
    %462 = vrot.lane.b32.xlu0 %v49, 111
    %v463 = vpop.permute.xlu0 %462
    %vm464 = vcmp.lt.s32.totalorder %v51, 111
    %v465 = vsel %vm464, %v457, %v461
    %v466 = vsel %vm464, %v459, %v463
    %v467 = vsel %vm464, %v453, %v457
    %v468 = vsel %vm464, %v455, %v459
    %v469 = vsel %vm464, %v449, %v453
    %v470 = vsel %vm464, %v451, %v455
    %v471 = vsel %vm464, %v461, %v449
    %v472 = vsel %vm464, %v463, %v451
    %vm473 = vmand %vm367, %vm204
    %vm474 = vmand %vm368, %vm205
    %vm475 = vmand %vm369, %vm206
    %vm476 = vmand %vm370, %vm207
    %v477 = vsel %vm473, 1, 0
    %v478 = vsel %vm474, 1, 0
    %v479 = vsel %vm475, 1, 0
    %v480 = vsel %vm476, 1, 0
    %vm481 = vcmp.eq.s32.totalorder %v477, 1
    %vm482 = vcmp.eq.s32.totalorder %v478, 1
    %vm483 = vcmp.eq.s32.totalorder %v479, 1
    %vm484 = vcmp.eq.s32.totalorder %v480, 1
    %v485 = vsel %vm481, %v469, 0.0
    %v486 = vsel %vm482, %v467, 0.0
    %v487 = vsel %vm483, %v465, 0.0
    %v488 = vsel %vm484, %v471, 0.0
    %v489 = vsel %vm481, %v470, 0.0
    %v490 = vsel %vm482, %v468, 0.0
    %v491 = vsel %vm483, %v466, 0.0
    %v492 = vsel %vm484, %v472, 0.0
    %v493 = vpack.c.bf16 %v489, %v485
    %v494 = vpack.c.bf16 %v490, %v486
    %v495 = vpack.c.bf16 %v491, %v487
    %v496 = vpack.c.bf16 %v492, %v488
    %497 = vst [vmem:[#allocation2 + $0x100] sm:$0xff] %v493
    %498 = vst [vmem:[#allocation2 + $0x108] sm:$0xff] %v494
    %499 = vst [vmem:[#allocation2 + $0x110] sm:$0xff] %v495
    %500 = vst [vmem:[#allocation2 + $0x118] sm:$0xff] %v496
    %v501 = vld [vmem:[#allocation2] sm:$0xff]
    %v502 = vld [vmem:[#allocation2 + $0x8] sm:$0xff]
    %v503 = vld [vmem:[#allocation2 + $0x10] sm:$0xff]
    %v504 = vld [vmem:[#allocation2 + $0x18] sm:$0xff]
    %v505 = vld [vmem:[#allocation2 + $0x20] sm:$0xff]
    %v506 = vld [vmem:[#allocation2 + $0x28] sm:$0xff]
    %v507 = vld [vmem:[#allocation2 + $0x30] sm:$0xff]
    %v508 = vld [vmem:[#allocation2 + $0x38] sm:$0xff]
    %v509 = vld [vmem:[#allocation2 + $0x40] sm:$0xff]
    %v510 = vld [vmem:[#allocation2 + $0x48] sm:$0xff]
    %v511 = vld [vmem:[#allocation2 + $0x50] sm:$0xff]
    %v512 = vld [vmem:[#allocation2 + $0x58] sm:$0xff]
    %v513 = vld [vmem:[#allocation2 + $0x60] sm:$0xff]
    %v514 = vld [vmem:[#allocation2 + $0x68] sm:$0xff]
    %v515 = vld [vmem:[#allocation2 + $0x70] sm:$0xff]
    %v516 = vld [vmem:[#allocation2 + $0x78] sm:$0xff]
    %v517 = vld [vmem:[#allocation2 + $0x80] sm:$0xff]
    %v518 = vld [vmem:[#allocation2 + $0x88] sm:$0xff]
    %v519 = vld [vmem:[#allocation2 + $0x90] sm:$0xff]
    %v520 = vld [vmem:[#allocation2 + $0x98] sm:$0xff]
    %v521 = vld [vmem:[#allocation2 + $0xa0] sm:$0xff]
    %v522 = vld [vmem:[#allocation2 + $0xa8] sm:$0xff]
    %v523 = vld [vmem:[#allocation2 + $0xb0] sm:$0xff]
    %v524 = vld [vmem:[#allocation2 + $0xb8] sm:$0xff]
    %v525 = vld [vmem:[#allocation2 + $0xc0] sm:$0xff]
    %v526 = vld [vmem:[#allocation2 + $0xc8] sm:$0xff]
    %v527 = vld [vmem:[#allocation2 + $0xd0] sm:$0xff]
    %v528 = vld [vmem:[#allocation2 + $0xd8] sm:$0xff]
    %v529 = vld [vmem:[#allocation2 + $0xe0] sm:$0xff]
    %v530 = vld [vmem:[#allocation2 + $0xe8] sm:$0xff]
    %v531 = vld [vmem:[#allocation2 + $0xf0] sm:$0xff]
    %v532 = vld [vmem:[#allocation2 + $0xf8] sm:$0xff]
    %v533 = vld [vmem:[#allocation2 + $0x100] sm:$0xff]
    %v534 = vld [vmem:[#allocation2 + $0x108] sm:$0xff]
    %v535 = vld [vmem:[#allocation2 + $0x110] sm:$0xff]
    %v536 = vld [vmem:[#allocation2 + $0x118] sm:$0xff]
    %v537 = vld [vmem:[%s2] sm:$0xff]
    %v538 = vld [vmem:[%s2 + $0x8] sm:$0xff]
    %540 = vset.pattern.permute.xlu0 0
    %541 = vperm.xlu0 %540, %v537
    %v542 = vpop.permute.xlu0 %541
    %545 = vset.pattern.permute.xlu0 0
    %546 = vperm.xlu0 %545, %v538
    %v547 = vpop.permute.xlu0 %546
    %v551 = vunpack.c.l.b16 %v67
    %v552 = vunpack.c.h.b16 %v67
    %v553 = vunpack.c.l.b16 %v68
    %v554 = vunpack.c.h.b16 %v68
    %v555 = vpack.c.b16 %v553, %v551
    %v556 = vpack.c.b16 %v554, %v552
    %vm558 = vcmask 130048
    %v560 = vsel %vm558, %v556, 0
    %562 = vmatprep.subr.bf16.mxu0 %v502
    %563 = vmatpush1.bf16.msra.mxu0 %v501
    %564 = vmatprep.subr.bf16.mxu0 %v506
    %565 = vmatpush1.bf16.msra.mxu0 %v505
    %566 = vmatprep.subr.bf16.mxu0 %v510
    %567 = vmatpush1.bf16.msra.mxu0 %v509
    %568 = vmatprep.subr.bf16.mxu0 %v514
    %569 = vmatpush1.bf16.msra.mxu0 %v513
    %570 = vmatprep.subr.bf16.mxu0 %v518
    %571 = vmatpush1.bf16.msra.mxu0 %v517
    %572 = vmatprep.subr.bf16.mxu0 %v522
    %573 = vmatpush1.bf16.msra.mxu0 %v521
    %574 = vmatprep.subr.bf16.mxu0 %v526
    %575 = vmatpush1.bf16.msra.mxu0 %v525
    %576 = vmatprep.subr.bf16.mxu0 %v530
    %577 = vmatpush1.bf16.msra.mxu0 %v529
    %578 = vmatprep.subr.bf16.mxu0 %v534
    %579 = vmatpush1.bf16.msra.mxu0 %v533
    %580 = vmatprep.subr.bf16.mxu0 0
    %581 = vmatpush1.bf16.msra.mxu0 0
    %582 = vmatprep.subr.bf16.mxu0 0
    %583 = vmatpush1.bf16.msra.mxu0 0
    %584 = vmatprep.subr.bf16.mxu0 0
    %585 = vmatpush1.bf16.msra.mxu0 0
    %586 = vmatprep.subr.bf16.mxu0 0
    %587 = vmatpush1.bf16.msra.mxu0 0
    %588 = vmatprep.subr.bf16.mxu0 0
    %589 = vmatpush1.bf16.msra.mxu0 0
    %590 = vmatprep.subr.bf16.mxu0 0
    %591 = vmatpush1.bf16.msra.mxu0 0
    %592 = vmatprep.subr.bf16.mxu0 0
    %593 = vmatpush1.bf16.msra.mxu0 0
    %594 = vmatprep.mubr.bf16.mxu0 %v560
    %595 = vmatmul.mubr.bf16.gmra.mrb[0].mxu0 %v555
    %v596 = vpop.f32.mrb[0].mxu0
    %v597 = vadd.f32 %v542, %v596
    %v598 = vpop.f32.mrb[0].mxu0
    %v599 = vadd.f32 %v542, %v598
    %v600 = vpop.f32.mrb[0].mxu0
    %v601 = vadd.f32 %v547, %v600
    %v602 = vpop.f32.mrb[0].mxu0
    %v603 = vadd.f32 %v547, %v602
    %604 = vdwg.mxu0
    %605 = vmatprep.subr.bf16.mxu0 %v504
    %606 = vmatpush1.bf16.msra.mxu0 %v503
    %607 = vmatprep.subr.bf16.mxu0 %v508
    %608 = vmatpush1.bf16.msra.mxu0 %v507
    %609 = vmatprep.subr.bf16.mxu0 %v512
    %610 = vmatpush1.bf16.msra.mxu0 %v511
    %611 = vmatprep.subr.bf16.mxu0 %v516
    %612 = vmatpush1.bf16.msra.mxu0 %v515
    %613 = vmatprep.subr.bf16.mxu0 %v520
    %614 = vmatpush1.bf16.msra.mxu0 %v519
    %615 = vmatprep.subr.bf16.mxu0 %v524
    %616 = vmatpush1.bf16.msra.mxu0 %v523
    %617 = vmatprep.subr.bf16.mxu0 %v528
    %618 = vmatpush1.bf16.msra.mxu0 %v527
    %619 = vmatprep.subr.bf16.mxu0 %v532
    %620 = vmatpush1.bf16.msra.mxu0 %v531
    %621 = vmatprep.subr.bf16.mxu0 %v536
    %622 = vmatpush1.bf16.msra.mxu0 %v535
    %623 = vmatprep.subr.bf16.mxu0 0
    %624 = vmatpush1.bf16.msra.mxu0 0
    %625 = vmatprep.subr.bf16.mxu0 0
    %626 = vmatpush1.bf16.msra.mxu0 0
    %627 = vmatprep.subr.bf16.mxu0 0
    %628 = vmatpush1.bf16.msra.mxu0 0
    %629 = vmatprep.subr.bf16.mxu0 0
    %630 = vmatpush1.bf16.msra.mxu0 0
    %631 = vmatprep.subr.bf16.mxu0 0
    %632 = vmatpush1.bf16.msra.mxu0 0
    %633 = vmatprep.subr.bf16.mxu0 0
    %634 = vmatpush1.bf16.msra.mxu0 0
    %635 = vmatprep.subr.bf16.mxu0 0
    %636 = vmatpush1.bf16.msra.mxu0 0
    %637 = vmatprep.mubr.bf16.mxu0 %v560
    %638 = vmatmul.mubr.bf16.gmra.mrb[0].mxu0 %v555
    %v639 = vpop.f32.mrb[0].mxu0
    %v640 = vadd.f32 %v542, %v639
    %v641 = vpop.f32.mrb[0].mxu0
    %v642 = vadd.f32 %v542, %v641
    %v643 = vpop.f32.mrb[0].mxu0
    %v644 = vadd.f32 %v547, %v643
    %v645 = vpop.f32.mrb[0].mxu0
    %v646 = vadd.f32 %v547, %v645
    %647 = vdwg.mxu0
    %v648 = vmax.f32 %v597, 0.0
    %v649 = vmax.f32 %v599, 0.0
    %v650 = vmax.f32 %v640, 0.0
    %v651 = vmax.f32 %v642, 0.0
    %v652 = vmax.f32 %v601, 0.0
    %v653 = vmax.f32 %v603, 0.0
    %v654 = vmax.f32 %v644, 0.0
    %v655 = vmax.f32 %v646, 0.0
    %v656 = vld [vmem:[%s5] sm:$0xf]
    %v657 = vld [vmem:[%s5 + $0x4] sm:$0xf]
    %v658 = vld [vmem:[%s6] sm:$0xff]
    %v659 = vld [vmem:[%s6 + $0x8] sm:$0xff]
    %661 = vset.pattern.permute.xlu0 0
    %662 = vperm.xlu0 %661, %v658
    %v663 = vpop.permute.xlu0 %662
    %666 = vset.pattern.permute.xlu0 0
    %667 = vperm.xlu0 %666, %v659
    %v668 = vpop.permute.xlu0 %667
    %v672 = vunpack.c.l.b16 %v656
    %v673 = vunpack.c.l.b16 %v657
    %v674 = vpack.c.b16 %v673, %v672
    %v676 = vsel %vm558, %v674, 0
    %678 = vmatprep.subr.bf16.mxu0 %v286
    %679 = vmatpush1.bf16.msra.mxu0 %v285
    %680 = vmatprep.subr.bf16.mxu0 0
    %681 = vmatpush1.bf16.msra.mxu0 0
    %682 = vmatprep.subr.bf16.mxu0 0
    %683 = vmatpush1.bf16.msra.mxu0 0
    %684 = vmatprep.subr.bf16.mxu0 0
    %685 = vmatpush1.bf16.msra.mxu0 0
    %686 = vmatprep.subr.bf16.mxu0 0
    %687 = vmatpush1.bf16.msra.mxu0 0
    %688 = vmatprep.subr.bf16.mxu0 0
    %689 = vmatpush1.bf16.msra.mxu0 0
    %690 = vmatprep.subr.bf16.mxu0 0
    %691 = vmatpush1.bf16.msra.mxu0 0
    %692 = vmatprep.subr.bf16.mxu0 0
    %693 = vmatpush1.bf16.msra.mxu0 0
    %694 = vmatprep.subr.bf16.mxu0 0
    %695 = vmatpush1.bf16.msra.mxu0 0
    %696 = vmatprep.subr.bf16.mxu0 0
    %697 = vmatpush1.bf16.msra.mxu0 0
    %698 = vmatprep.subr.bf16.mxu0 0
    %699 = vmatpush1.bf16.msra.mxu0 0
    %700 = vmatprep.subr.bf16.mxu0 0
    %701 = vmatpush1.bf16.msra.mxu0 0
    %702 = vmatprep.subr.bf16.mxu0 0
    %703 = vmatpush1.bf16.msra.mxu0 0
    %704 = vmatprep.subr.bf16.mxu0 0
    %705 = vmatpush1.bf16.msra.mxu0 0
    %706 = vmatprep.subr.bf16.mxu0 0
    %707 = vmatpush1.bf16.msra.mxu0 0
    %708 = vmatprep.subr.bf16.mxu0 0
    %709 = vmatpush1.bf16.msra.mxu0 0
    %710 = vmatprep.mubr.bf16.mxu0 0
    %711 = vmatmul.mubr.bf16.gmra.mrb[0].mxu0 %v676
    %v712 = vpop.f32.mrb[0].mxu0
    %v713 = vadd.f32 %v663, %v712
    %v714 = vpop.f32.mrb[0].mxu0
    %v715 = vadd.f32 %v663, %v714
    %v716 = vpop.f32.mrb[0].mxu0
    %v717 = vadd.f32 %v668, %v716
    %v718 = vpop.f32.mrb[0].mxu0
    %v719 = vadd.f32 %v668, %v718
    %720 = vdwg.mxu0
    %721 = vmatprep.subr.bf16.mxu0 %v288
    %722 = vmatpush1.bf16.msra.mxu0 %v287
    %723 = vmatprep.subr.bf16.mxu0 0
    %724 = vmatpush1.bf16.msra.mxu0 0
    %725 = vmatprep.subr.bf16.mxu0 0
    %726 = vmatpush1.bf16.msra.mxu0 0
    %727 = vmatprep.subr.bf16.mxu0 0
    %728 = vmatpush1.bf16.msra.mxu0 0
    %729 = vmatprep.subr.bf16.mxu0 0
    %730 = vmatpush1.bf16.msra.mxu0 0
    %731 = vmatprep.subr.bf16.mxu0 0
    %732 = vmatpush1.bf16.msra.mxu0 0
    %733 = vmatprep.subr.bf16.mxu0 0
    %734 = vmatpush1.bf16.msra.mxu0 0
    %735 = vmatprep.subr.bf16.mxu0 0
    %736 = vmatpush1.bf16.msra.mxu0 0
    %737 = vmatprep.subr.bf16.mxu0 0
    %738 = vmatpush1.bf16.msra.mxu0 0
    %739 = vmatprep.subr.bf16.mxu0 0
    %740 = vmatpush1.bf16.msra.mxu0 0
    %741 = vmatprep.subr.bf16.mxu0 0
    %742 = vmatpush1.bf16.msra.mxu0 0
    %743 = vmatprep.subr.bf16.mxu0 0
    %744 = vmatpush1.bf16.msra.mxu0 0
    %745 = vmatprep.subr.bf16.mxu0 0
    %746 = vmatpush1.bf16.msra.mxu0 0
    %747 = vmatprep.subr.bf16.mxu0 0
    %748 = vmatpush1.bf16.msra.mxu0 0
    %749 = vmatprep.subr.bf16.mxu0 0
    %750 = vmatpush1.bf16.msra.mxu0 0
    %751 = vmatprep.subr.bf16.mxu0 0
    %752 = vmatpush1.bf16.msra.mxu0 0
    %753 = vmatprep.mubr.bf16.mxu0 0
    %754 = vmatmul.mubr.bf16.gmra.mrb[0].mxu0 %v676
    %v755 = vpop.f32.mrb[0].mxu0
    %v756 = vadd.f32 %v663, %v755
    %v757 = vpop.f32.mrb[0].mxu0
    %v758 = vadd.f32 %v663, %v757
    %v759 = vpop.f32.mrb[0].mxu0
    %v760 = vadd.f32 %v668, %v759
    %v761 = vpop.f32.mrb[0].mxu0
    %v762 = vadd.f32 %v668, %v761
    %763 = vdwg.mxu0
    %v764 = vld [vmem:[%s3] sm:$0xff]
    %v765 = vld [vmem:[%s3 + $0x8] sm:$0xff]
    %766 = vrot.lane.b32.xlu0 %v648, 17
    %v767 = vpop.permute.xlu0 %766
    %768 = vrot.lane.b32.xlu0 %v652, 17
    %v769 = vpop.permute.xlu0 %768
    %770 = vrot.lane.b32.xlu0 %v649, 17
    %v771 = vpop.permute.xlu0 %770
    %772 = vrot.lane.b32.xlu0 %v653, 17
    %v773 = vpop.permute.xlu0 %772
    %774 = vrot.lane.b32.xlu0 %v650, 17
    %v775 = vpop.permute.xlu0 %774
    %776 = vrot.lane.b32.xlu0 %v654, 17
    %v777 = vpop.permute.xlu0 %776
    %778 = vrot.lane.b32.xlu0 %v651, 17
    %v779 = vpop.permute.xlu0 %778
    %780 = vrot.lane.b32.xlu0 %v655, 17
    %v781 = vpop.permute.xlu0 %780
    %v782 = vsel %vm85, %v775, %v779
    %v783 = vsel %vm85, %v777, %v781
    %v784 = vsel %vm85, %v771, %v775
    %v785 = vsel %vm85, %v773, %v777
    %v786 = vsel %vm85, %v767, %v771
    %v787 = vsel %vm85, %v769, %v773
    %v788 = vsel %vm85, %v779, %v767
    %v789 = vsel %vm85, %v781, %v769
    %v790 = vsel %vm110, %v788, 0.0
    %v791 = vsel %vm111, %v786, 0.0
    %v792 = vsel %vm112, %v784, 0.0
    %v793 = vsel %vm113, %v782, 0.0
    %v794 = vsel %vm110, %v789, 0.0
    %v795 = vsel %vm111, %v787, 0.0
    %v796 = vsel %vm112, %v785, 0.0
    %v797 = vsel %vm113, %v783, 0.0
    %v798 = vpack.c.bf16 %v794, %v790
    %v799 = vpack.c.bf16 %v795, %v791
    %v800 = vpack.c.bf16 %v796, %v792
    %v801 = vpack.c.bf16 %v797, %v793
    %802 = vst [vmem:[#allocation2] sm:$0xff] %v798
    %803 = vst [vmem:[#allocation2 + $0x8] sm:$0xff] %v799
    %804 = vst [vmem:[#allocation2 + $0x10] sm:$0xff] %v800
    %805 = vst [vmem:[#allocation2 + $0x18] sm:$0xff] %v801
    %806 = vrot.lane.b32.xlu0 %v648, 16
    %v807 = vpop.permute.xlu0 %806
    %808 = vrot.lane.b32.xlu0 %v652, 16
    %v809 = vpop.permute.xlu0 %808
    %810 = vrot.lane.b32.xlu0 %v649, 16
    %v811 = vpop.permute.xlu0 %810
    %812 = vrot.lane.b32.xlu0 %v653, 16
    %v813 = vpop.permute.xlu0 %812
    %814 = vrot.lane.b32.xlu0 %v650, 16
    %v815 = vpop.permute.xlu0 %814
    %816 = vrot.lane.b32.xlu0 %v654, 16
    %v817 = vpop.permute.xlu0 %816
    %818 = vrot.lane.b32.xlu0 %v651, 16
    %v819 = vpop.permute.xlu0 %818
    %820 = vrot.lane.b32.xlu0 %v655, 16
    %v821 = vpop.permute.xlu0 %820
    %v822 = vsel %vm146, %v815, %v819
    %v823 = vsel %vm146, %v817, %v821
    %v824 = vsel %vm146, %v811, %v815
    %v825 = vsel %vm146, %v813, %v817
    %v826 = vsel %vm146, %v807, %v811
    %v827 = vsel %vm146, %v809, %v813
    %v828 = vsel %vm146, %v819, %v807
    %v829 = vsel %vm146, %v821, %v809
    %v830 = vsel %vm159, %v828, 0.0
    %v831 = vsel %vm160, %v826, 0.0
    %v832 = vsel %vm161, %v824, 0.0
    %v833 = vsel %vm162, %v822, 0.0
    %v834 = vsel %vm159, %v829, 0.0
    %v835 = vsel %vm160, %v827, 0.0
    %v836 = vsel %vm161, %v825, 0.0
    %v837 = vsel %vm162, %v823, 0.0
    %v838 = vpack.c.bf16 %v834, %v830
    %v839 = vpack.c.bf16 %v835, %v831
    %v840 = vpack.c.bf16 %v836, %v832
    %v841 = vpack.c.bf16 %v837, %v833
    %842 = vst [vmem:[#allocation2 + $0x20] sm:$0xff] %v838
    %843 = vst [vmem:[#allocation2 + $0x28] sm:$0xff] %v839
    %844 = vst [vmem:[#allocation2 + $0x30] sm:$0xff] %v840
    %845 = vst [vmem:[#allocation2 + $0x38] sm:$0xff] %v841
    %846 = vrot.lane.b32.xlu0 %v648, 15
    %v847 = vpop.permute.xlu0 %846
    %848 = vrot.lane.b32.xlu0 %v652, 15
    %v849 = vpop.permute.xlu0 %848
    %850 = vrot.lane.b32.xlu0 %v649, 15
    %v851 = vpop.permute.xlu0 %850
    %852 = vrot.lane.b32.xlu0 %v653, 15
    %v853 = vpop.permute.xlu0 %852
    %854 = vrot.lane.b32.xlu0 %v650, 15
    %v855 = vpop.permute.xlu0 %854
    %856 = vrot.lane.b32.xlu0 %v654, 15
    %v857 = vpop.permute.xlu0 %856
    %858 = vrot.lane.b32.xlu0 %v651, 15
    %v859 = vpop.permute.xlu0 %858
    %860 = vrot.lane.b32.xlu0 %v655, 15
    %v861 = vpop.permute.xlu0 %860
    %v862 = vsel %vm195, %v855, %v859
    %v863 = vsel %vm195, %v857, %v861
    %v864 = vsel %vm195, %v851, %v855
    %v865 = vsel %vm195, %v853, %v857
    %v866 = vsel %vm195, %v847, %v851
    %v867 = vsel %vm195, %v849, %v853
    %v868 = vsel %vm195, %v859, %v847
    %v869 = vsel %vm195, %v861, %v849
    %v870 = vsel %vm216, %v868, 0.0
    %v871 = vsel %vm217, %v866, 0.0
    %v872 = vsel %vm218, %v864, 0.0
    %v873 = vsel %vm219, %v862, 0.0
    %v874 = vsel %vm216, %v869, 0.0
    %v875 = vsel %vm217, %v867, 0.0
    %v876 = vsel %vm218, %v865, 0.0
    %v877 = vsel %vm219, %v863, 0.0
    %v878 = vpack.c.bf16 %v874, %v870
    %v879 = vpack.c.bf16 %v875, %v871
    %v880 = vpack.c.bf16 %v876, %v872
    %v881 = vpack.c.bf16 %v877, %v873
    %882 = vst [vmem:[#allocation2 + $0x40] sm:$0xff] %v878
    %883 = vst [vmem:[#allocation2 + $0x48] sm:$0xff] %v879
    %884 = vst [vmem:[#allocation2 + $0x50] sm:$0xff] %v880
    %885 = vst [vmem:[#allocation2 + $0x58] sm:$0xff] %v881
    %886 = vrot.lane.b32.xlu0 %v648, 1
    %v887 = vpop.permute.xlu0 %886
    %888 = vrot.lane.b32.xlu0 %v652, 1
    %v889 = vpop.permute.xlu0 %888
    %890 = vrot.lane.b32.xlu0 %v649, 1
    %v891 = vpop.permute.xlu0 %890
    %892 = vrot.lane.b32.xlu0 %v653, 1
    %v893 = vpop.permute.xlu0 %892
    %894 = vrot.lane.b32.xlu0 %v650, 1
    %v895 = vpop.permute.xlu0 %894
    %896 = vrot.lane.b32.xlu0 %v654, 1
    %v897 = vpop.permute.xlu0 %896
    %898 = vrot.lane.b32.xlu0 %v651, 1
    %v899 = vpop.permute.xlu0 %898
    %900 = vrot.lane.b32.xlu0 %v655, 1
    %v901 = vpop.permute.xlu0 %900
    %v902 = vsel %vm252, %v895, %v899
    %v903 = vsel %vm252, %v897, %v901
    %v904 = vsel %vm252, %v891, %v895
    %v905 = vsel %vm252, %v893, %v897
    %v906 = vsel %vm252, %v887, %v891
    %v907 = vsel %vm252, %v889, %v893
    %v908 = vsel %vm252, %v899, %v887
    %v909 = vsel %vm252, %v901, %v889
    %v910 = vsel %vm265, %v908, 0.0
    %v911 = vsel %vm266, %v906, 0.0
    %v912 = vsel %vm267, %v904, 0.0
    %v913 = vsel %vm268, %v902, 0.0
    %v914 = vsel %vm265, %v909, 0.0
    %v915 = vsel %vm266, %v907, 0.0
    %v916 = vsel %vm267, %v905, 0.0
    %v917 = vsel %vm268, %v903, 0.0
    %v918 = vpack.c.bf16 %v914, %v910
    %v919 = vpack.c.bf16 %v915, %v911
    %v920 = vpack.c.bf16 %v916, %v912
    %v921 = vpack.c.bf16 %v917, %v913
    %922 = vst [vmem:[#allocation2 + $0x60] sm:$0xff] %v918
    %923 = vst [vmem:[#allocation2 + $0x68] sm:$0xff] %v919
    %924 = vst [vmem:[#allocation2 + $0x70] sm:$0xff] %v920
    %925 = vst [vmem:[#allocation2 + $0x78] sm:$0xff] %v921
    %v926 = vpack.c.bf16 %v652, %v648
    %v927 = vpack.c.bf16 %v653, %v649
    %v928 = vpack.c.bf16 %v654, %v650
    %v929 = vpack.c.bf16 %v655, %v651
    %930 = vst [vmem:[#allocation2 + $0x80] sm:$0xff] %v926
    %931 = vst [vmem:[#allocation2 + $0x88] sm:$0xff] %v927
    %932 = vst [vmem:[#allocation2 + $0x90] sm:$0xff] %v928
    %933 = vst [vmem:[#allocation2 + $0x98] sm:$0xff] %v929
    %934 = vrot.lane.b32.xlu0 %v648, 127
    %v935 = vpop.permute.xlu0 %934
    %936 = vrot.lane.b32.xlu0 %v652, 127
    %v937 = vpop.permute.xlu0 %936
    %938 = vrot.lane.b32.xlu0 %v649, 127
    %v939 = vpop.permute.xlu0 %938
    %940 = vrot.lane.b32.xlu0 %v653, 127
    %v941 = vpop.permute.xlu0 %940
    %942 = vrot.lane.b32.xlu0 %v650, 127
    %v943 = vpop.permute.xlu0 %942
    %944 = vrot.lane.b32.xlu0 %v654, 127
    %v945 = vpop.permute.xlu0 %944
    %946 = vrot.lane.b32.xlu0 %v651, 127
    %v947 = vpop.permute.xlu0 %946
    %948 = vrot.lane.b32.xlu0 %v655, 127
    %v949 = vpop.permute.xlu0 %948
    %v950 = vsel %vm309, %v943, %v947
    %v951 = vsel %vm309, %v945, %v949
    %v952 = vsel %vm309, %v939, %v943
    %v953 = vsel %vm309, %v941, %v945
    %v954 = vsel %vm309, %v935, %v939
    %v955 = vsel %vm309, %v937, %v941
    %v956 = vsel %vm309, %v947, %v935
    %v957 = vsel %vm309, %v949, %v937
    %v958 = vsel %vm322, %v954, 0.0
    %v959 = vsel %vm323, %v952, 0.0
    %v960 = vsel %vm324, %v950, 0.0
    %v961 = vsel %vm325, %v956, 0.0
    %v962 = vsel %vm322, %v955, 0.0
    %v963 = vsel %vm323, %v953, 0.0
    %v964 = vsel %vm324, %v951, 0.0
    %v965 = vsel %vm325, %v957, 0.0
    %v966 = vpack.c.bf16 %v962, %v958
    %v967 = vpack.c.bf16 %v963, %v959
    %v968 = vpack.c.bf16 %v964, %v960
    %v969 = vpack.c.bf16 %v965, %v961
    %970 = vst [vmem:[#allocation2 + $0xa0] sm:$0xff] %v966
    %971 = vst [vmem:[#allocation2 + $0xa8] sm:$0xff] %v967
    %972 = vst [vmem:[#allocation2 + $0xb0] sm:$0xff] %v968
    %973 = vst [vmem:[#allocation2 + $0xb8] sm:$0xff] %v969
    %974 = vrot.lane.b32.xlu0 %v648, 113
    %v975 = vpop.permute.xlu0 %974
    %976 = vrot.lane.b32.xlu0 %v652, 113
    %v977 = vpop.permute.xlu0 %976
    %978 = vrot.lane.b32.xlu0 %v649, 113
    %v979 = vpop.permute.xlu0 %978
    %980 = vrot.lane.b32.xlu0 %v653, 113
    %v981 = vpop.permute.xlu0 %980
    %982 = vrot.lane.b32.xlu0 %v650, 113
    %v983 = vpop.permute.xlu0 %982
    %984 = vrot.lane.b32.xlu0 %v654, 113
    %v985 = vpop.permute.xlu0 %984
    %986 = vrot.lane.b32.xlu0 %v651, 113
    %v987 = vpop.permute.xlu0 %986
    %988 = vrot.lane.b32.xlu0 %v655, 113
    %v989 = vpop.permute.xlu0 %988
    %v990 = vsel %vm358, %v983, %v987
    %v991 = vsel %vm358, %v985, %v989
    %v992 = vsel %vm358, %v979, %v983
    %v993 = vsel %vm358, %v981, %v985
    %v994 = vsel %vm358, %v975, %v979
    %v995 = vsel %vm358, %v977, %v981
    %v996 = vsel %vm358, %v987, %v975
    %v997 = vsel %vm358, %v989, %v977
    %v998 = vsel %vm379, %v994, 0.0
    %v999 = vsel %vm380, %v992, 0.0
    %v1000 = vsel %vm381, %v990, 0.0
    %v1001 = vsel %vm382, %v996, 0.0
    %v1002 = vsel %vm379, %v995, 0.0
    %v1003 = vsel %vm380, %v993, 0.0
    %v1004 = vsel %vm381, %v991, 0.0
    %v1005 = vsel %vm382, %v997, 0.0
    %v1006 = vpack.c.bf16 %v1002, %v998
    %v1007 = vpack.c.bf16 %v1003, %v999
    %v1008 = vpack.c.bf16 %v1004, %v1000
    %v1009 = vpack.c.bf16 %v1005, %v1001
    %1010 = vst [vmem:[#allocation2 + $0xc0] sm:$0xff] %v1006
    %1011 = vst [vmem:[#allocation2 + $0xc8] sm:$0xff] %v1007
    %1012 = vst [vmem:[#allocation2 + $0xd0] sm:$0xff] %v1008
    %1013 = vst [vmem:[#allocation2 + $0xd8] sm:$0xff] %v1009
    %1014 = vrot.lane.b32.xlu0 %v648, 112
    %v1015 = vpop.permute.xlu0 %1014
    %1016 = vrot.lane.b32.xlu0 %v652, 112
    %v1017 = vpop.permute.xlu0 %1016
    %1018 = vrot.lane.b32.xlu0 %v649, 112
    %v1019 = vpop.permute.xlu0 %1018
    %1020 = vrot.lane.b32.xlu0 %v653, 112
    %v1021 = vpop.permute.xlu0 %1020
    %1022 = vrot.lane.b32.xlu0 %v650, 112
    %v1023 = vpop.permute.xlu0 %1022
    %1024 = vrot.lane.b32.xlu0 %v654, 112
    %v1025 = vpop.permute.xlu0 %1024
    %1026 = vrot.lane.b32.xlu0 %v651, 112
    %v1027 = vpop.permute.xlu0 %1026
    %1028 = vrot.lane.b32.xlu0 %v655, 112
    %v1029 = vpop.permute.xlu0 %1028
    %v1030 = vsel %vm415, %v1023, %v1027
    %v1031 = vsel %vm415, %v1025, %v1029
    %v1032 = vsel %vm415, %v1019, %v1023
    %v1033 = vsel %vm415, %v1021, %v1025
    %v1034 = vsel %vm415, %v1015, %v1019
    %v1035 = vsel %vm415, %v1017, %v1021
    %v1036 = vsel %vm415, %v1027, %v1015
    %v1037 = vsel %vm415, %v1029, %v1017
    %v1038 = vsel %vm428, %v1034, 0.0
    %v1039 = vsel %vm429, %v1032, 0.0
    %v1040 = vsel %vm430, %v1030, 0.0
    %v1041 = vsel %vm431, %v1036, 0.0
    %v1042 = vsel %vm428, %v1035, 0.0
    %v1043 = vsel %vm429, %v1033, 0.0
    %v1044 = vsel %vm430, %v1031, 0.0
    %v1045 = vsel %vm431, %v1037, 0.0
    %v1046 = vpack.c.bf16 %v1042, %v1038
    %v1047 = vpack.c.bf16 %v1043, %v1039
    %v1048 = vpack.c.bf16 %v1044, %v1040
    %v1049 = vpack.c.bf16 %v1045, %v1041
    %1050 = vst [vmem:[#allocation2 + $0xe0] sm:$0xff] %v1046
    %1051 = vst [vmem:[#allocation2 + $0xe8] sm:$0xff] %v1047
    %1052 = vst [vmem:[#allocation2 + $0xf0] sm:$0xff] %v1048
    %1053 = vst [vmem:[#allocation2 + $0xf8] sm:$0xff] %v1049
    %1054 = vrot.lane.b32.xlu0 %v648, 111
    %v1055 = vpop.permute.xlu0 %1054
    %1056 = vrot.lane.b32.xlu0 %v652, 111
    %v1057 = vpop.permute.xlu0 %1056
    %1058 = vrot.lane.b32.xlu0 %v649, 111
    %v1059 = vpop.permute.xlu0 %1058
    %1060 = vrot.lane.b32.xlu0 %v653, 111
    %v1061 = vpop.permute.xlu0 %1060
    %1062 = vrot.lane.b32.xlu0 %v650, 111
    %v1063 = vpop.permute.xlu0 %1062
    %1064 = vrot.lane.b32.xlu0 %v654, 111
    %v1065 = vpop.permute.xlu0 %1064
    %1066 = vrot.lane.b32.xlu0 %v651, 111
    %v1067 = vpop.permute.xlu0 %1066
    %1068 = vrot.lane.b32.xlu0 %v655, 111
    %v1069 = vpop.permute.xlu0 %1068
    %v1070 = vsel %vm464, %v1063, %v1067
    %v1071 = vsel %vm464, %v1065, %v1069
    %v1072 = vsel %vm464, %v1059, %v1063
    %v1073 = vsel %vm464, %v1061, %v1065
    %v1074 = vsel %vm464, %v1055, %v1059
    %v1075 = vsel %vm464, %v1057, %v1061
    %v1076 = vsel %vm464, %v1067, %v1055
    %v1077 = vsel %vm464, %v1069, %v1057
    %v1078 = vsel %vm481, %v1074, 0.0
    %v1079 = vsel %vm482, %v1072, 0.0
    %v1080 = vsel %vm483, %v1070, 0.0
    %v1081 = vsel %vm484, %v1076, 0.0
    %v1082 = vsel %vm481, %v1075, 0.0
    %v1083 = vsel %vm482, %v1073, 0.0
    %v1084 = vsel %vm483, %v1071, 0.0
    %v1085 = vsel %vm484, %v1077, 0.0
    %v1086 = vpack.c.bf16 %v1082, %v1078
    %v1087 = vpack.c.bf16 %v1083, %v1079
    %v1088 = vpack.c.bf16 %v1084, %v1080
    %v1089 = vpack.c.bf16 %v1085, %v1081
    %1090 = vst [vmem:[#allocation2 + $0x100] sm:$0xff] %v1086
    %1091 = vst [vmem:[#allocation2 + $0x108] sm:$0xff] %v1087
    %1092 = vst [vmem:[#allocation2 + $0x110] sm:$0xff] %v1088
    %1093 = vst [vmem:[#allocation2 + $0x118] sm:$0xff] %v1089
    %v1094 = vld [vmem:[#allocation2] sm:$0xff]
    %v1095 = vld [vmem:[#allocation2 + $0x8] sm:$0xff]
    %v1096 = vld [vmem:[#allocation2 + $0x10] sm:$0xff]
    %v1097 = vld [vmem:[#allocation2 + $0x18] sm:$0xff]
    %v1098 = vld [vmem:[#allocation2 + $0x20] sm:$0xff]
    %v1099 = vld [vmem:[#allocation2 + $0x28] sm:$0xff]
    %v1100 = vld [vmem:[#allocation2 + $0x30] sm:$0xff]
    %v1101 = vld [vmem:[#allocation2 + $0x38] sm:$0xff]
    %v1102 = vld [vmem:[#allocation2 + $0x40] sm:$0xff]
    %v1103 = vld [vmem:[#allocation2 + $0x48] sm:$0xff]
    %v1104 = vld [vmem:[#allocation2 + $0x50] sm:$0xff]
    %v1105 = vld [vmem:[#allocation2 + $0x58] sm:$0xff]
    %v1106 = vld [vmem:[#allocation2 + $0x60] sm:$0xff]
    %v1107 = vld [vmem:[#allocation2 + $0x68] sm:$0xff]
    %v1108 = vld [vmem:[#allocation2 + $0x70] sm:$0xff]
    %v1109 = vld [vmem:[#allocation2 + $0x78] sm:$0xff]
    %v1110 = vld [vmem:[#allocation2 + $0x80] sm:$0xff]
    %v1111 = vld [vmem:[#allocation2 + $0x88] sm:$0xff]
    %v1112 = vld [vmem:[#allocation2 + $0x90] sm:$0xff]
    %v1113 = vld [vmem:[#allocation2 + $0x98] sm:$0xff]
    %v1114 = vld [vmem:[#allocation2 + $0xa0] sm:$0xff]
    %v1115 = vld [vmem:[#allocation2 + $0xa8] sm:$0xff]
    %v1116 = vld [vmem:[#allocation2 + $0xb0] sm:$0xff]
    %v1117 = vld [vmem:[#allocation2 + $0xb8] sm:$0xff]
    %v1118 = vld [vmem:[#allocation2 + $0xc0] sm:$0xff]
    %v1119 = vld [vmem:[#allocation2 + $0xc8] sm:$0xff]
    %v1120 = vld [vmem:[#allocation2 + $0xd0] sm:$0xff]
    %v1121 = vld [vmem:[#allocation2 + $0xd8] sm:$0xff]
    %v1122 = vld [vmem:[#allocation2 + $0xe0] sm:$0xff]
    %v1123 = vld [vmem:[#allocation2 + $0xe8] sm:$0xff]
    %v1124 = vld [vmem:[#allocation2 + $0xf0] sm:$0xff]
    %v1125 = vld [vmem:[#allocation2 + $0xf8] sm:$0xff]
    %v1126 = vld [vmem:[#allocation2 + $0x100] sm:$0xff]
    %v1127 = vld [vmem:[#allocation2 + $0x108] sm:$0xff]
    %v1128 = vld [vmem:[#allocation2 + $0x110] sm:$0xff]
    %v1129 = vld [vmem:[#allocation2 + $0x118] sm:$0xff]
    %v1130 = vld [vmem:[%s4] sm:$0xff]
    %v1131 = vld [vmem:[%s4 + $0x8] sm:$0xff]
    %1133 = vset.pattern.permute.xlu0 0
    %1134 = vperm.xlu0 %1133, %v1130
    %v1135 = vpop.permute.xlu0 %1134
    %1138 = vset.pattern.permute.xlu0 0
    %1139 = vperm.xlu0 %1138, %v1131
    %v1140 = vpop.permute.xlu0 %1139
    %v1144 = vunpack.c.l.b16 %v764
    %v1145 = vunpack.c.h.b16 %v764
    %v1146 = vunpack.c.l.b16 %v765
    %v1147 = vunpack.c.h.b16 %v765
    %v1148 = vpack.c.b16 %v1146, %v1144
    %v1149 = vpack.c.b16 %v1147, %v1145
    %v1152 = vsel %vm558, %v1149, 0
    %1154 = vmatprep.subr.bf16.mxu0 %v1095
    %1155 = vmatpush1.bf16.msra.mxu0 %v1094
    %1156 = vmatprep.subr.bf16.mxu0 %v1099
    %1157 = vmatpush1.bf16.msra.mxu0 %v1098
    %1158 = vmatprep.subr.bf16.mxu0 %v1103
    %1159 = vmatpush1.bf16.msra.mxu0 %v1102
    %1160 = vmatprep.subr.bf16.mxu0 %v1107
    %1161 = vmatpush1.bf16.msra.mxu0 %v1106
    %1162 = vmatprep.subr.bf16.mxu0 %v1111
    %1163 = vmatpush1.bf16.msra.mxu0 %v1110
    %1164 = vmatprep.subr.bf16.mxu0 %v1115
    %1165 = vmatpush1.bf16.msra.mxu0 %v1114
    %1166 = vmatprep.subr.bf16.mxu0 %v1119
    %1167 = vmatpush1.bf16.msra.mxu0 %v1118
    %1168 = vmatprep.subr.bf16.mxu0 %v1123
    %1169 = vmatpush1.bf16.msra.mxu0 %v1122
    %1170 = vmatprep.subr.bf16.mxu0 %v1127
    %1171 = vmatpush1.bf16.msra.mxu0 %v1126
    %1172 = vmatprep.subr.bf16.mxu0 0
    %1173 = vmatpush1.bf16.msra.mxu0 0
    %1174 = vmatprep.subr.bf16.mxu0 0
    %1175 = vmatpush1.bf16.msra.mxu0 0
    %1176 = vmatprep.subr.bf16.mxu0 0
    %1177 = vmatpush1.bf16.msra.mxu0 0
    %1178 = vmatprep.subr.bf16.mxu0 0
    %1179 = vmatpush1.bf16.msra.mxu0 0
    %1180 = vmatprep.subr.bf16.mxu0 0
    %1181 = vmatpush1.bf16.msra.mxu0 0
    %1182 = vmatprep.subr.bf16.mxu0 0
    %1183 = vmatpush1.bf16.msra.mxu0 0
    %1184 = vmatprep.subr.bf16.mxu0 0
    %1185 = vmatpush1.bf16.msra.mxu0 0
    %1186 = vmatprep.mubr.bf16.mxu0 %v1152
    %1187 = vmatmul.mubr.bf16.gmra.mrb[0].mxu0 %v1148
    %v1188 = vpop.f32.mrb[0].mxu0
    %v1189 = vadd.f32 %v1135, %v1188
    %v1190 = vpop.f32.mrb[0].mxu0
    %v1191 = vadd.f32 %v1135, %v1190
    %v1192 = vpop.f32.mrb[0].mxu0
    %v1193 = vadd.f32 %v1140, %v1192
    %v1194 = vpop.f32.mrb[0].mxu0
    %v1195 = vadd.f32 %v1140, %v1194
    %1196 = vdwg.mxu0
    %1197 = vmatprep.subr.bf16.mxu0 %v1097
    %1198 = vmatpush1.bf16.msra.mxu0 %v1096
    %1199 = vmatprep.subr.bf16.mxu0 %v1101
    %1200 = vmatpush1.bf16.msra.mxu0 %v1100
    %1201 = vmatprep.subr.bf16.mxu0 %v1105
    %1202 = vmatpush1.bf16.msra.mxu0 %v1104
    %1203 = vmatprep.subr.bf16.mxu0 %v1109
    %1204 = vmatpush1.bf16.msra.mxu0 %v1108
    %1205 = vmatprep.subr.bf16.mxu0 %v1113
    %1206 = vmatpush1.bf16.msra.mxu0 %v1112
    %1207 = vmatprep.subr.bf16.mxu0 %v1117
    %1208 = vmatpush1.bf16.msra.mxu0 %v1116
    %1209 = vmatprep.subr.bf16.mxu0 %v1121
    %1210 = vmatpush1.bf16.msra.mxu0 %v1120
    %1211 = vmatprep.subr.bf16.mxu0 %v1125
    %1212 = vmatpush1.bf16.msra.mxu0 %v1124
    %1213 = vmatprep.subr.bf16.mxu0 %v1129
    %1214 = vmatpush1.bf16.msra.mxu0 %v1128
    %1215 = vmatprep.subr.bf16.mxu0 0
    %1216 = vmatpush1.bf16.msra.mxu0 0
    %1217 = vmatprep.subr.bf16.mxu0 0
    %1218 = vmatpush1.bf16.msra.mxu0 0
    %1219 = vmatprep.subr.bf16.mxu0 0
    %1220 = vmatpush1.bf16.msra.mxu0 0
    %1221 = vmatprep.subr.bf16.mxu0 0
    %1222 = vmatpush1.bf16.msra.mxu0 0
    %1223 = vmatprep.subr.bf16.mxu0 0
    %1224 = vmatpush1.bf16.msra.mxu0 0
    %1225 = vmatprep.subr.bf16.mxu0 0
    %1226 = vmatpush1.bf16.msra.mxu0 0
    %1227 = vmatprep.subr.bf16.mxu0 0
    %1228 = vmatpush1.bf16.msra.mxu0 0
    %1229 = vmatprep.mubr.bf16.mxu0 %v1152
    %1230 = vmatmul.mubr.bf16.gmra.mrb[0].mxu0 %v1148
    %v1231 = vpop.f32.mrb[0].mxu0
    %v1232 = vadd.f32 %v1135, %v1231
    %v1233 = vpop.f32.mrb[0].mxu0
    %v1234 = vadd.f32 %v1135, %v1233
    %v1235 = vpop.f32.mrb[0].mxu0
    %v1236 = vadd.f32 %v1140, %v1235
    %v1237 = vpop.f32.mrb[0].mxu0
    %v1238 = vadd.f32 %v1140, %v1237
    %1239 = vdwg.mxu0
    %v1240 = vadd.f32 %v1189, %v713
    %v1241 = vadd.f32 %v1191, %v715
    %v1242 = vadd.f32 %v1232, %v756
    %v1243 = vadd.f32 %v1234, %v758
    %v1244 = vadd.f32 %v1193, %v717
    %v1245 = vadd.f32 %v1195, %v719
    %v1246 = vadd.f32 %v1236, %v760
    %v1247 = vadd.f32 %v1238, %v762
    %v1248 = vmax.f32 %v1240, 0.0
    %v1249 = vmax.f32 %v1241, 0.0
    %v1250 = vmax.f32 %v1242, 0.0
    %v1251 = vmax.f32 %v1243, 0.0
    %v1252 = vmax.f32 %v1244, 0.0
    %v1253 = vmax.f32 %v1245, 0.0
    %v1254 = vmax.f32 %v1246, 0.0
    %v1255 = vmax.f32 %v1247, 0.0
    %1256 = vst [vmem:[#allocation6] sm:$0xff] %v1248
    %1257 = vst [vmem:[#allocation6 + $0x8] sm:$0xff] %v1249
    %1258 = vst [vmem:[#allocation6 + $0x10] sm:$0xff] %v1250
    %1259 = vst [vmem:[#allocation6 + $0x18] sm:$0xff] %v1251
    %1260 = vst [vmem:[#allocation6 + $0x20] sm:$0xff] %v1252
    %1261 = vst [vmem:[#allocation6 + $0x28] sm:$0xff] %v1253
    %1262 = vst [vmem:[#allocation6 + $0x30] sm:$0xff] %v1254
    %1263 = vst [vmem:[#allocation6 + $0x38] sm:$0xff] %v1255
    // Predicated region
    $region34: #{tpu_custom_call.1} parent=1 // pred_check
      _
    $region35: #{tpu_custom_call.1} parent=1 // pred_check_branch
      %1265 = sbr.rel (0) target = $region37
    $region36: #{tpu_custom_call.1} parent=1 // pred_region
      %s1267 = ssub.s32 1024, 1024
      %1268 = vsyncadd [#allocation5], %s1267
      %s1269 = sshll.u32 [#allocation6], 4
      %s1270 = int_to_ptr.vmem [resolvable:$true] %s1269
      %1275 = dma.vmem_to_hbm [thread:$0]  %s1270, 1024, %s7, [#allocation5], 512, 512, 32
    $region37: #{tpu_custom_call.1} parent=1 // pred_fallthru
      _
    // Predicated region
    $region38: #{tpu_custom_call.1} parent=1 // pred_check
      _
    $region39: #{tpu_custom_call.1} parent=1 // pred_check_branch
      %1277 = sbr.rel (0) target = $region41
    $region40: #{tpu_custom_call.1} parent=1 // pred_region
      %1278 = dma.done [#allocation5], 1024
    $region41: #{tpu_custom_call.1} parent=1 // pred_fallthru
      _
    %1279 = vsyncpa [#allocation4], 1
    %1280 = vsyncpa [#allocation5], 1

</llo_original>
